<compile_context>
chip_gen: v7x
topology: tpu7x:2x2x1
jax: 0.10.0
libtpu: 0.0.40
codegen_flags: <defaults>
</compile_context>

<pallas_src>
import numpy as np
import jax
import jax.numpy as jnp
from jax.experimental import pallas as pl
from jax.experimental.pallas import tpu as pltpu


# ----------------------------- helpers (match the PyTorch module) ---------------------

def l2m(sr, tl):
    return 12 * np.log2(sr / (440.0 * tl)) + 69


def m2l(sr, m):
    return sr / (440.0 * 2 ** ((m - 69) / 12))


def midi_range(sr, lmin, lmax):
    return int(np.ceil(l2m(sr, lmax))), int(l2m(sr, lmin))


# ----------------------------------- Pallas kernel ------------------------------------

def _yingram_kernel(frames_ref, mab_ref, ltri_ref, interp_ref, out_ref, corr_ref):
    x = frames_ref[...].astype(jnp.float32)                 # [TF, w]
    w = x.shape[1]
    tau = mab_ref.shape[1]

    # cumsum[w-1-t] - cumsum[t] + total via a single constant matmul.
    # The "+ total" term is folded into mab (entries {0,1,2}, exact in bf16).
    sq = x * x
    ab = jnp.dot(sq.astype(jnp.bfloat16), mab_ref[...],
                 preferred_element_type=jnp.float32)         # [TF, tau]

    # Circular autocorrelation corr[t] = sum_k x[k] * x[(k+t) % w]  (== irfft(|rfft|^2)).
    # One roll (XLU) + one lane reduction per lag; columns are written directly into the
    # VMEM scratch so there is no masked compare/mul/add chain on the VPU.
    for t in range(tau):
        rolled = x if t == 0 else pltpu.roll(x, shift=w - t, axis=1)
        corr_ref[:, t:t + 1] = jnp.sum(x * rolled, axis=1, keepdims=True)

    diff = ab - 2.0 * corr_ref[...]                          # [TF, tau]

    # Cumulative mean-normalized difference:
    #   cumdiff[t] = diff[t] / (sum_{1<=i<=t} diff[i] + 1e-7) * t   (t >= 1), cumdiff[0] = 1
    cum = jnp.dot(diff.astype(jnp.bfloat16), ltri_ref[...],
                  preferred_element_type=jnp.float32)        # [TF, tau]
    lane = jax.lax.broadcasted_iota(jnp.int32, (1, tau), 1)
    tau_f = lane.astype(jnp.float32)
    cumdiff = diff * pl.reciprocal(cum + 1e-7, approx=True) * tau_f   # EUP reciprocal
    cumdiff = jnp.where(lane == 0, jnp.float32(1.0), cumdiff)

    # Fused midi-lag gather + linear interpolation as one matmul into a lane-dense,
    # 128-padded output block (padded columns are zero and sliced off in the wrapper).
    out_ref[...] = jnp.dot(cumdiff.astype(jnp.bfloat16), interp_ref[...],
                           preferred_element_type=jnp.float32)


# ----------------------------------- wrapper module -----------------------------------

class YingramPallas:
    """Pallas-TPU implementation of the PyTorch `Yingram` forward pass."""

    def __init__(self, strides, windows, lmin, lmax, bins=1, sr=16000, frame_tile=256):
        self.strides = strides
        self.windows = windows
        self.lmin, self.lmax = lmin, lmax
        self.bins = bins
        self.sr = sr
        # Large frame tiles (>=128/256 rows, multiple of 8) keep the MXU fed and amortize
        # the per-grid-step pipeline overhead; tiny inputs are clamped in __call__.
        self.frame_tile = max(8, (int(frame_tile) // 8) * 8)
        self.mmin, self.mmax = midi_range(sr, lmin, lmax)

        w, tau = windows, lmax

        # ---- midi-scale lags and fused gather + interpolation matrix W[tau, Mpad] ----
        steps = 1.0 / bins
        mids = np.arange(self.mmin, self.mmax + 1, step=steps, dtype=np.float32)
        lags = m2l(float(sr), mids.astype(np.float64))
        lceil = np.ceil(lags).astype(np.int64)
        lfloor = np.floor(lags).astype(np.int64)
        M = int(lags.shape[0])
        self.n_midi = M
        Mpad = ((M + 127) // 128) * 128      # lane-dense output block (multiple of 128)
        self.n_midi_padded = Mpad

        den = (lceil - lfloor).astype(np.float64)
        # den == 0 (lag exactly on an integer) would divide by zero in the reference;
        # folding the interpolation host-side degrades that case to cumdiff[lfloor].
        frac = np.where(den > 0, (lags - lfloor) / np.where(den > 0, den, 1.0), 0.0)
        W = np.zeros((tau, Mpad), np.float64)
        cols = np.arange(M)
        W[lfloor, cols] += 1.0 - frac
        W[lceil, cols] += frac

        # ---- "A - B + total" selector: sum_i sq[i] * ([i < w-1-t] - [i < t] + 1) ------
        i = np.arange(w)[:, None]
        t = np.arange(tau)[None, :]
        mab = ((i < (w - 1 - t)).astype(np.float64)
               - (i < t).astype(np.float64) + 1.0)           # entries in {0, 1, 2}

        # ---- cumulative-sum selector: cum[t] = sum_{1<=i<=t} diff[i] ------------------
        ii = np.arange(tau)[:, None]
        tt = np.arange(tau)[None, :]
        ltri = ((ii >= 1) & (ii <= tt)).astype(np.float64)

        # Constants as bf16 MXU weights (mab/ltri exact in bf16; W interp weights get
        # ~1e-3 relative rounding) -> single-pass MXU with f32 accumulation, no HIGHEST.
        self._mab = jnp.asarray(mab, dtype=jnp.bfloat16)
        self._ltri = jnp.asarray(ltri, dtype=jnp.bfloat16)
        self._interp = jnp.asarray(W, dtype=jnp.bfloat16)

    def __call__(self, audio):
        # audio: [B, T] float32 in [-1, 1]
        B, T = audio.shape
        w, s, tau = self.windows, self.strides, self.lmax
        M, Mpad = self.n_midi, self.n_midi_padded
        nf = T // s + 1

        # Framing (plain JAX glue): pad right by w, unfold with stride s.
        # TODO(synk): for production configs, pass padded audio with memory_space=pl.ANY and
        # DMA the contiguous (tf_tile-1)*s + w span per grid step instead of materializing
        # the ~w/s-times inflated unfold in HBM.
        padded = jnp.pad(audio.astype(jnp.float32), ((0, 0), (0, w)))
        idx = np.arange(nf)[:, None] * s + np.arange(w)[None, :]
        frames2d = padded[:, idx].reshape(B * nf, w)

        bf = B * nf
        tf_tile = min(self.frame_tile, ((bf + 7) // 8) * 8)
        bfp = ((bf + tf_tile - 1) // tf_tile) * tf_tile
        if bfp != bf:
            frames2d = jnp.pad(frames2d, ((0, bfp - bf), (0, 0)))

        const = lambda shape: pl.BlockSpec(shape, lambda i: (0, 0))
        # TODO(synk): at production sizes (w, tau ~ 2048) move mab/ltri to memory_space=pl.ANY
        # with a one-time DMA into single-buffered VMEM scratch so the pipeline does not
        # double-buffer ~16 MB constants (v7x has only 64 MiB VMEM).
        out = pl.pallas_call(
            _yingram_kernel,
            out_shape=jax.ShapeDtypeStruct((bfp, Mpad), jnp.float32),
            grid_spec=pltpu.PrefetchScalarGridSpec(
                num_scalar_prefetch=0,
                grid=(bfp // tf_tile,),
                in_specs=[
                    pl.BlockSpec((tf_tile, w), lambda i: (i, 0)),    # frames tile
                    const((w, tau)),                                 # mab (+ total folded)
                    const((tau, tau)),                               # ltri
                    const((tau, Mpad)),                              # fused gather+interp
                ],
                out_specs=pl.BlockSpec((tf_tile, Mpad), lambda i: (i, 0)),
                scratch_shapes=[pltpu.VMEM((tf_tile, tau), jnp.float32)],
            ),
            compiler_params=pltpu.CompilerParams(
                dimension_semantics=("parallel",),     # frame tiles are independent
                vmem_limit_bytes=32 * 1024 * 1024,
            ),
        )(frames2d, self._mab, self._ltri, self._interp)

        return out[:bf, :M].reshape(B, nf, M)           # [B, T//s + 1, bins*(mmax-mmin+1)]


# ------------------------- float64 numpy reference of the PyTorch forward -------------

def _yingram_reference(audio, strides, windows, lmin, lmax, bins, sr):
    w, tau = windows, lmax
    B, T = audio.shape
    nf = T // strides + 1
    padded = np.pad(audio.astype(np.float64), ((0, 0), (0, w)))
    idx = np.arange(nf)[:, None] * strides + np.arange(w)[None, :]
    frames = padded[:, idx]                                            # [B, nf, w]
    fft = np.fft.rfft(frames, axis=-1)
    corr = np.fft.irfft(np.abs(fft) ** 2, n=w, axis=-1)
    cumsum = np.concatenate(
        [np.zeros((B, nf, 1)), np.cumsum(frames ** 2, axis=-1)], axis=-1)
    diff = (np.flip(cumsum[..., w - tau:w], axis=-1) - 2 * corr[..., :tau]
            + cumsum[..., w:w + 1] - cumsum[..., :tau])
    cumdiff = diff[..., 1:] / (np.cumsum(diff[..., 1:], axis=-1) + 1e-7)
    cumdiff = cumdiff * np.arange(1, tau)
    cumdiff = np.concatenate([np.ones((B, nf, 1)), cumdiff], axis=-1)
    mmin, mmax = midi_range(sr, lmin, lmax)
    mids = np.arange(mmin, mmax + 1, step=1.0 / bins, dtype=np.float32)
    lags = m2l(float(sr), mids.astype(np.float64))
    lceil = np.ceil(lags).astype(np.int64)
    lfloor = np.floor(lags).astype(np.int64)
    return ((cumdiff[..., lceil] - cumdiff[..., lfloor]) * (lags - lfloor)
            / (lceil - lfloor) + cumdiff[..., lfloor])


# -------------------------------------- main ------------------------------------------

if __name__ == "__main__":
    key = jax.random.PRNGKey(0)
    B, T = 2, 256
    audio = jax.random.uniform(key, (B, T), jnp.float32, minval=-1.0, maxval=1.0)

    # small, internally consistent hyperparameters: windows >= lmax, lmin >= 1
    strides, windows, lmin, lmax, bins, sr = 32, 128, 4, 32, 1, 16000
    ying = YingramPallas(strides=strides, windows=windows, lmin=lmin, lmax=lmax,
                         bins=bins, sr=sr)
    out = jax.block_until_ready(ying(audio))
    assert out.shape == (B, T // strides + 1, ying.n_midi)

    ref = _yingram_reference(np.asarray(audio), strides, windows, lmin, lmax, bins, sr)
    np.testing.assert_allclose(np.asarray(out), ref, rtol=0.05, atol=0.05)
    print("KERNEL_OK")
</pallas_src>

<mosaic_0001>
module attributes {stable_mosaic.version = 11 : i64} {
  func.func @_yingram_kernel(%arg0: i32, %arg1: memref<24x128xf32, #tpu.memory_space<vmem>>, %arg2: memref<128x32xbf16, #tpu.memory_space<vmem>>, %arg3: memref<32x32xbf16, #tpu.memory_space<vmem>>, %arg4: memref<32x128xbf16, #tpu.memory_space<vmem>>, %arg5: memref<24x128xf32, #tpu.memory_space<vmem>>, %arg6: memref<24x32xf32, #tpu.memory_space<vmem>>) attributes {dimension_semantics = [#tpu.dimension_semantics<parallel>], iteration_bounds = array<i64: 1>, scalar_prefetch = 0 : i64, scratch_operands = 1 : i64, tpu.core_type = #tpu.core_type<tc>, window_params = [{transform_indices = @transform_0, window_bounds = array<i64: 24, 128>}, {pipeline_mode = #tpu.pipeline_mode<synchronous>, transform_indices = @transform_1, window_bounds = array<i64: 128, 32>}, {pipeline_mode = #tpu.pipeline_mode<synchronous>, transform_indices = @transform_2, window_bounds = array<i64: 32, 32>}, {pipeline_mode = #tpu.pipeline_mode<synchronous>, transform_indices = @transform_3, window_bounds = array<i64: 32, 128>}, {transform_indices = @transform_4, window_bounds = array<i64: 24, 128>}]} {
    %c0 = arith.constant 0 : index
    %c0_0 = arith.constant 0 : index
    %0 = vector.load %arg1[%c0, %c0_0] : memref<24x128xf32, #tpu.memory_space<vmem>>, vector<24x128xf32>
    %1 = arith.mulf %0, %0 : vector<24x128xf32>
    %2 = arith.truncf %1 : vector<24x128xf32> to vector<24x128xbf16>
    %c0_1 = arith.constant 0 : index
    %c0_2 = arith.constant 0 : index
    %3 = vector.load %arg2[%c0_1, %c0_2] : memref<128x32xbf16, #tpu.memory_space<vmem>>, vector<128x32xbf16>
    %cst = arith.constant dense<0.000000e+00> : vector<24x32xf32>
    %4 = tpu.matmul %2, %3, %cst {dimension_numbers = #tpu.dot_dimension_numbers<[1], [0], [0], [1], [0, 0, 1, 1], [], []>} : vector<24x128xbf16>, vector<128x32xbf16>, vector<24x32xf32> -> vector<24x32xf32>
    %5 = arith.mulf %0, %0 : vector<24x128xf32>
    %cst_3 = arith.constant dense<0.000000e+00> : vector<24xf32>
    %6 = vector.multi_reduction <add>, %5, %cst_3 [1] : vector<24x128xf32> to vector<24xf32>
    %7 = vector.shape_cast %6 : vector<24xf32> to vector<24x1xf32>
    %c0_4 = arith.constant 0 : index
    %c0_5 = arith.constant 0 : index
    %8 = vector.load %arg6[%c0_4, %c0_5] : memref<24x32xf32, #tpu.memory_space<vmem>>, vector<24x1xf32>
    tpu.vector_store %arg6[%c0_4, %c0_5], %7 {strides = array<i32>} : memref<24x32xf32, #tpu.memory_space<vmem>>, vector<24x1xf32>,
    %c127_i32 = arith.constant 127 : i32
    %9 = tpu.dynamic_rotate %0 by %c127_i32 dim 1 : vector<24x128xf32>, i32 -> vector<24x128xf32>
    %10 = arith.mulf %0, %9 : vector<24x128xf32>
    %cst_6 = arith.constant dense<0.000000e+00> : vector<24xf32>
    %11 = vector.multi_reduction <add>, %10, %cst_6 [1] : vector<24x128xf32> to vector<24xf32>
    %12 = vector.shape_cast %11 : vector<24xf32> to vector<24x1xf32>
    %c0_7 = arith.constant 0 : index
    %c1 = arith.constant 1 : index
    %13 = vector.load %arg6[%c0_7, %c1] : memref<24x32xf32, #tpu.memory_space<vmem>>, vector<24x1xf32>
    tpu.vector_store %arg6[%c0_7, %c1], %12 {strides = array<i32>} : memref<24x32xf32, #tpu.memory_space<vmem>>, vector<24x1xf32>,
    %c126_i32 = arith.constant 126 : i32
    %14 = tpu.dynamic_rotate %0 by %c126_i32 dim 1 : vector<24x128xf32>, i32 -> vector<24x128xf32>
    %15 = arith.mulf %0, %14 : vector<24x128xf32>
    %cst_8 = arith.constant dense<0.000000e+00> : vector<24xf32>
    %16 = vector.multi_reduction <add>, %15, %cst_8 [1] : vector<24x128xf32> to vector<24xf32>
    %17 = vector.shape_cast %16 : vector<24xf32> to vector<24x1xf32>
    %c0_9 = arith.constant 0 : index
    %c2 = arith.constant 2 : index
    %18 = vector.load %arg6[%c0_9, %c2] : memref<24x32xf32, #tpu.memory_space<vmem>>, vector<24x1xf32>
    tpu.vector_store %arg6[%c0_9, %c2], %17 {strides = array<i32>} : memref<24x32xf32, #tpu.memory_space<vmem>>, vector<24x1xf32>,
    %c125_i32 = arith.constant 125 : i32
    %19 = tpu.dynamic_rotate %0 by %c125_i32 dim 1 : vector<24x128xf32>, i32 -> vector<24x128xf32>
    %20 = arith.mulf %0, %19 : vector<24x128xf32>
    %cst_10 = arith.constant dense<0.000000e+00> : vector<24xf32>
    %21 = vector.multi_reduction <add>, %20, %cst_10 [1] : vector<24x128xf32> to vector<24xf32>
    %22 = vector.shape_cast %21 : vector<24xf32> to vector<24x1xf32>
    %c0_11 = arith.constant 0 : index
    %c3 = arith.constant 3 : index
    %23 = vector.load %arg6[%c0_11, %c3] : memref<24x32xf32, #tpu.memory_space<vmem>>, vector<24x1xf32>
    tpu.vector_store %arg6[%c0_11, %c3], %22 {strides = array<i32>} : memref<24x32xf32, #tpu.memory_space<vmem>>, vector<24x1xf32>,
    %c124_i32 = arith.constant 124 : i32
    %24 = tpu.dynamic_rotate %0 by %c124_i32 dim 1 : vector<24x128xf32>, i32 -> vector<24x128xf32>
    %25 = arith.mulf %0, %24 : vector<24x128xf32>
    %cst_12 = arith.constant dense<0.000000e+00> : vector<24xf32>
    %26 = vector.multi_reduction <add>, %25, %cst_12 [1] : vector<24x128xf32> to vector<24xf32>
    %27 = vector.shape_cast %26 : vector<24xf32> to vector<24x1xf32>
    %c0_13 = arith.constant 0 : index
    %c4 = arith.constant 4 : index
    %28 = vector.load %arg6[%c0_13, %c4] : memref<24x32xf32, #tpu.memory_space<vmem>>, vector<24x1xf32>
    tpu.vector_store %arg6[%c0_13, %c4], %27 {strides = array<i32>} : memref<24x32xf32, #tpu.memory_space<vmem>>, vector<24x1xf32>,
    %c123_i32 = arith.constant 123 : i32
    %29 = tpu.dynamic_rotate %0 by %c123_i32 dim 1 : vector<24x128xf32>, i32 -> vector<24x128xf32>
    %30 = arith.mulf %0, %29 : vector<24x128xf32>
    %cst_14 = arith.constant dense<0.000000e+00> : vector<24xf32>
    %31 = vector.multi_reduction <add>, %30, %cst_14 [1] : vector<24x128xf32> to vector<24xf32>
    %32 = vector.shape_cast %31 : vector<24xf32> to vector<24x1xf32>
    %c0_15 = arith.constant 0 : index
    %c5 = arith.constant 5 : index
    %33 = vector.load %arg6[%c0_15, %c5] : memref<24x32xf32, #tpu.memory_space<vmem>>, vector<24x1xf32>
    tpu.vector_store %arg6[%c0_15, %c5], %32 {strides = array<i32>} : memref<24x32xf32, #tpu.memory_space<vmem>>, vector<24x1xf32>,
    %c122_i32 = arith.constant 122 : i32
    %34 = tpu.dynamic_rotate %0 by %c122_i32 dim 1 : vector<24x128xf32>, i32 -> vector<24x128xf32>
    %35 = arith.mulf %0, %34 : vector<24x128xf32>
    %cst_16 = arith.constant dense<0.000000e+00> : vector<24xf32>
    %36 = vector.multi_reduction <add>, %35, %cst_16 [1] : vector<24x128xf32> to vector<24xf32>
    %37 = vector.shape_cast %36 : vector<24xf32> to vector<24x1xf32>
    %c0_17 = arith.constant 0 : index
    %c6 = arith.constant 6 : index
    %38 = vector.load %arg6[%c0_17, %c6] : memref<24x32xf32, #tpu.memory_space<vmem>>, vector<24x1xf32>
    tpu.vector_store %arg6[%c0_17, %c6], %37 {strides = array<i32>} : memref<24x32xf32, #tpu.memory_space<vmem>>, vector<24x1xf32>,
    %c121_i32 = arith.constant 121 : i32
    %39 = tpu.dynamic_rotate %0 by %c121_i32 dim 1 : vector<24x128xf32>, i32 -> vector<24x128xf32>
    %40 = arith.mulf %0, %39 : vector<24x128xf32>
    %cst_18 = arith.constant dense<0.000000e+00> : vector<24xf32>
    %41 = vector.multi_reduction <add>, %40, %cst_18 [1] : vector<24x128xf32> to vector<24xf32>
    %42 = vector.shape_cast %41 : vector<24xf32> to vector<24x1xf32>
    %c0_19 = arith.constant 0 : index
    %c7 = arith.constant 7 : index
    %43 = vector.load %arg6[%c0_19, %c7] : memref<24x32xf32, #tpu.memory_space<vmem>>, vector<24x1xf32>
    tpu.vector_store %arg6[%c0_19, %c7], %42 {strides = array<i32>} : memref<24x32xf32, #tpu.memory_space<vmem>>, vector<24x1xf32>,
    %c120_i32 = arith.constant 120 : i32
    %44 = tpu.dynamic_rotate %0 by %c120_i32 dim 1 : vector<24x128xf32>, i32 -> vector<24x128xf32>
    %45 = arith.mulf %0, %44 : vector<24x128xf32>
    %cst_20 = arith.constant dense<0.000000e+00> : vector<24xf32>
    %46 = vector.multi_reduction <add>, %45, %cst_20 [1] : vector<24x128xf32> to vector<24xf32>
    %47 = vector.shape_cast %46 : vector<24xf32> to vector<24x1xf32>
    %c0_21 = arith.constant 0 : index
    %c8 = arith.constant 8 : index
    %48 = vector.load %arg6[%c0_21, %c8] : memref<24x32xf32, #tpu.memory_space<vmem>>, vector<24x1xf32>
    tpu.vector_store %arg6[%c0_21, %c8], %47 {strides = array<i32>} : memref<24x32xf32, #tpu.memory_space<vmem>>, vector<24x1xf32>,
    %c119_i32 = arith.constant 119 : i32
    %49 = tpu.dynamic_rotate %0 by %c119_i32 dim 1 : vector<24x128xf32>, i32 -> vector<24x128xf32>
    %50 = arith.mulf %0, %49 : vector<24x128xf32>
    %cst_22 = arith.constant dense<0.000000e+00> : vector<24xf32>
    %51 = vector.multi_reduction <add>, %50, %cst_22 [1] : vector<24x128xf32> to vector<24xf32>
    %52 = vector.shape_cast %51 : vector<24xf32> to vector<24x1xf32>
    %c0_23 = arith.constant 0 : index
    %c9 = arith.constant 9 : index
    %53 = vector.load %arg6[%c0_23, %c9] : memref<24x32xf32, #tpu.memory_space<vmem>>, vector<24x1xf32>
    tpu.vector_store %arg6[%c0_23, %c9], %52 {strides = array<i32>} : memref<24x32xf32, #tpu.memory_space<vmem>>, vector<24x1xf32>,
    %c118_i32 = arith.constant 118 : i32
    %54 = tpu.dynamic_rotate %0 by %c118_i32 dim 1 : vector<24x128xf32>, i32 -> vector<24x128xf32>
    %55 = arith.mulf %0, %54 : vector<24x128xf32>
    %cst_24 = arith.constant dense<0.000000e+00> : vector<24xf32>
    %56 = vector.multi_reduction <add>, %55, %cst_24 [1] : vector<24x128xf32> to vector<24xf32>
    %57 = vector.shape_cast %56 : vector<24xf32> to vector<24x1xf32>
    %c0_25 = arith.constant 0 : index
    %c10 = arith.constant 10 : index
    %58 = vector.load %arg6[%c0_25, %c10] : memref<24x32xf32, #tpu.memory_space<vmem>>, vector<24x1xf32>
    tpu.vector_store %arg6[%c0_25, %c10], %57 {strides = array<i32>} : memref<24x32xf32, #tpu.memory_space<vmem>>, vector<24x1xf32>,
    %c117_i32 = arith.constant 117 : i32
    %59 = tpu.dynamic_rotate %0 by %c117_i32 dim 1 : vector<24x128xf32>, i32 -> vector<24x128xf32>
    %60 = arith.mulf %0, %59 : vector<24x128xf32>
    %cst_26 = arith.constant dense<0.000000e+00> : vector<24xf32>
    %61 = vector.multi_reduction <add>, %60, %cst_26 [1] : vector<24x128xf32> to vector<24xf32>
    %62 = vector.shape_cast %61 : vector<24xf32> to vector<24x1xf32>
    %c0_27 = arith.constant 0 : index
    %c11 = arith.constant 11 : index
    %63 = vector.load %arg6[%c0_27, %c11] : memref<24x32xf32, #tpu.memory_space<vmem>>, vector<24x1xf32>
    tpu.vector_store %arg6[%c0_27, %c11], %62 {strides = array<i32>} : memref<24x32xf32, #tpu.memory_space<vmem>>, vector<24x1xf32>,
    %c116_i32 = arith.constant 116 : i32
    %64 = tpu.dynamic_rotate %0 by %c116_i32 dim 1 : vector<24x128xf32>, i32 -> vector<24x128xf32>
    %65 = arith.mulf %0, %64 : vector<24x128xf32>
    %cst_28 = arith.constant dense<0.000000e+00> : vector<24xf32>
    %66 = vector.multi_reduction <add>, %65, %cst_28 [1] : vector<24x128xf32> to vector<24xf32>
    %67 = vector.shape_cast %66 : vector<24xf32> to vector<24x1xf32>
    %c0_29 = arith.constant 0 : index
    %c12 = arith.constant 12 : index
    %68 = vector.load %arg6[%c0_29, %c12] : memref<24x32xf32, #tpu.memory_space<vmem>>, vector<24x1xf32>
    tpu.vector_store %arg6[%c0_29, %c12], %67 {strides = array<i32>} : memref<24x32xf32, #tpu.memory_space<vmem>>, vector<24x1xf32>,
    %c115_i32 = arith.constant 115 : i32
    %69 = tpu.dynamic_rotate %0 by %c115_i32 dim 1 : vector<24x128xf32>, i32 -> vector<24x128xf32>
    %70 = arith.mulf %0, %69 : vector<24x128xf32>
    %cst_30 = arith.constant dense<0.000000e+00> : vector<24xf32>
    %71 = vector.multi_reduction <add>, %70, %cst_30 [1] : vector<24x128xf32> to vector<24xf32>
    %72 = vector.shape_cast %71 : vector<24xf32> to vector<24x1xf32>
    %c0_31 = arith.constant 0 : index
    %c13 = arith.constant 13 : index
    %73 = vector.load %arg6[%c0_31, %c13] : memref<24x32xf32, #tpu.memory_space<vmem>>, vector<24x1xf32>
    tpu.vector_store %arg6[%c0_31, %c13], %72 {strides = array<i32>} : memref<24x32xf32, #tpu.memory_space<vmem>>, vector<24x1xf32>,
    %c114_i32 = arith.constant 114 : i32
    %74 = tpu.dynamic_rotate %0 by %c114_i32 dim 1 : vector<24x128xf32>, i32 -> vector<24x128xf32>
    %75 = arith.mulf %0, %74 : vector<24x128xf32>
    %cst_32 = arith.constant dense<0.000000e+00> : vector<24xf32>
    %76 = vector.multi_reduction <add>, %75, %cst_32 [1] : vector<24x128xf32> to vector<24xf32>
    %77 = vector.shape_cast %76 : vector<24xf32> to vector<24x1xf32>
    %c0_33 = arith.constant 0 : index
    %c14 = arith.constant 14 : index
    %78 = vector.load %arg6[%c0_33, %c14] : memref<24x32xf32, #tpu.memory_space<vmem>>, vector<24x1xf32>
    tpu.vector_store %arg6[%c0_33, %c14], %77 {strides = array<i32>} : memref<24x32xf32, #tpu.memory_space<vmem>>, vector<24x1xf32>,
    %c113_i32 = arith.constant 113 : i32
    %79 = tpu.dynamic_rotate %0 by %c113_i32 dim 1 : vector<24x128xf32>, i32 -> vector<24x128xf32>
    %80 = arith.mulf %0, %79 : vector<24x128xf32>
    %cst_34 = arith.constant dense<0.000000e+00> : vector<24xf32>
    %81 = vector.multi_reduction <add>, %80, %cst_34 [1] : vector<24x128xf32> to vector<24xf32>
    %82 = vector.shape_cast %81 : vector<24xf32> to vector<24x1xf32>
    %c0_35 = arith.constant 0 : index
    %c15 = arith.constant 15 : index
    %83 = vector.load %arg6[%c0_35, %c15] : memref<24x32xf32, #tpu.memory_space<vmem>>, vector<24x1xf32>
    tpu.vector_store %arg6[%c0_35, %c15], %82 {strides = array<i32>} : memref<24x32xf32, #tpu.memory_space<vmem>>, vector<24x1xf32>,
    %c112_i32 = arith.constant 112 : i32
    %84 = tpu.dynamic_rotate %0 by %c112_i32 dim 1 : vector<24x128xf32>, i32 -> vector<24x128xf32>
    %85 = arith.mulf %0, %84 : vector<24x128xf32>
    %cst_36 = arith.constant dense<0.000000e+00> : vector<24xf32>
    %86 = vector.multi_reduction <add>, %85, %cst_36 [1] : vector<24x128xf32> to vector<24xf32>
    %87 = vector.shape_cast %86 : vector<24xf32> to vector<24x1xf32>
    %c0_37 = arith.constant 0 : index
    %c16 = arith.constant 16 : index
    %88 = vector.load %arg6[%c0_37, %c16] : memref<24x32xf32, #tpu.memory_space<vmem>>, vector<24x1xf32>
    tpu.vector_store %arg6[%c0_37, %c16], %87 {strides = array<i32>} : memref<24x32xf32, #tpu.memory_space<vmem>>, vector<24x1xf32>,
    %c111_i32 = arith.constant 111 : i32
    %89 = tpu.dynamic_rotate %0 by %c111_i32 dim 1 : vector<24x128xf32>, i32 -> vector<24x128xf32>
    %90 = arith.mulf %0, %89 : vector<24x128xf32>
    %cst_38 = arith.constant dense<0.000000e+00> : vector<24xf32>
    %91 = vector.multi_reduction <add>, %90, %cst_38 [1] : vector<24x128xf32> to vector<24xf32>
    %92 = vector.shape_cast %91 : vector<24xf32> to vector<24x1xf32>
    %c0_39 = arith.constant 0 : index
    %c17 = arith.constant 17 : index
    %93 = vector.load %arg6[%c0_39, %c17] : memref<24x32xf32, #tpu.memory_space<vmem>>, vector<24x1xf32>
    tpu.vector_store %arg6[%c0_39, %c17], %92 {strides = array<i32>} : memref<24x32xf32, #tpu.memory_space<vmem>>, vector<24x1xf32>,
    %c110_i32 = arith.constant 110 : i32
    %94 = tpu.dynamic_rotate %0 by %c110_i32 dim 1 : vector<24x128xf32>, i32 -> vector<24x128xf32>
    %95 = arith.mulf %0, %94 : vector<24x128xf32>
    %cst_40 = arith.constant dense<0.000000e+00> : vector<24xf32>
    %96 = vector.multi_reduction <add>, %95, %cst_40 [1] : vector<24x128xf32> to vector<24xf32>
    %97 = vector.shape_cast %96 : vector<24xf32> to vector<24x1xf32>
    %c0_41 = arith.constant 0 : index
    %c18 = arith.constant 18 : index
    %98 = vector.load %arg6[%c0_41, %c18] : memref<24x32xf32, #tpu.memory_space<vmem>>, vector<24x1xf32>
    tpu.vector_store %arg6[%c0_41, %c18], %97 {strides = array<i32>} : memref<24x32xf32, #tpu.memory_space<vmem>>, vector<24x1xf32>,
    %c109_i32 = arith.constant 109 : i32
    %99 = tpu.dynamic_rotate %0 by %c109_i32 dim 1 : vector<24x128xf32>, i32 -> vector<24x128xf32>
    %100 = arith.mulf %0, %99 : vector<24x128xf32>
    %cst_42 = arith.constant dense<0.000000e+00> : vector<24xf32>
    %101 = vector.multi_reduction <add>, %100, %cst_42 [1] : vector<24x128xf32> to vector<24xf32>
    %102 = vector.shape_cast %101 : vector<24xf32> to vector<24x1xf32>
    %c0_43 = arith.constant 0 : index
    %c19 = arith.constant 19 : index
    %103 = vector.load %arg6[%c0_43, %c19] : memref<24x32xf32, #tpu.memory_space<vmem>>, vector<24x1xf32>
    tpu.vector_store %arg6[%c0_43, %c19], %102 {strides = array<i32>} : memref<24x32xf32, #tpu.memory_space<vmem>>, vector<24x1xf32>,
    %c108_i32 = arith.constant 108 : i32
    %104 = tpu.dynamic_rotate %0 by %c108_i32 dim 1 : vector<24x128xf32>, i32 -> vector<24x128xf32>
    %105 = arith.mulf %0, %104 : vector<24x128xf32>
    %cst_44 = arith.constant dense<0.000000e+00> : vector<24xf32>
    %106 = vector.multi_reduction <add>, %105, %cst_44 [1] : vector<24x128xf32> to vector<24xf32>
    %107 = vector.shape_cast %106 : vector<24xf32> to vector<24x1xf32>
    %c0_45 = arith.constant 0 : index
    %c20 = arith.constant 20 : index
    %108 = vector.load %arg6[%c0_45, %c20] : memref<24x32xf32, #tpu.memory_space<vmem>>, vector<24x1xf32>
    tpu.vector_store %arg6[%c0_45, %c20], %107 {strides = array<i32>} : memref<24x32xf32, #tpu.memory_space<vmem>>, vector<24x1xf32>,
    %c107_i32 = arith.constant 107 : i32
    %109 = tpu.dynamic_rotate %0 by %c107_i32 dim 1 : vector<24x128xf32>, i32 -> vector<24x128xf32>
    %110 = arith.mulf %0, %109 : vector<24x128xf32>
    %cst_46 = arith.constant dense<0.000000e+00> : vector<24xf32>
    %111 = vector.multi_reduction <add>, %110, %cst_46 [1] : vector<24x128xf32> to vector<24xf32>
    %112 = vector.shape_cast %111 : vector<24xf32> to vector<24x1xf32>
    %c0_47 = arith.constant 0 : index
    %c21 = arith.constant 21 : index
    %113 = vector.load %arg6[%c0_47, %c21] : memref<24x32xf32, #tpu.memory_space<vmem>>, vector<24x1xf32>
    tpu.vector_store %arg6[%c0_47, %c21], %112 {strides = array<i32>} : memref<24x32xf32, #tpu.memory_space<vmem>>, vector<24x1xf32>,
    %c106_i32 = arith.constant 106 : i32
    %114 = tpu.dynamic_rotate %0 by %c106_i32 dim 1 : vector<24x128xf32>, i32 -> vector<24x128xf32>
    %115 = arith.mulf %0, %114 : vector<24x128xf32>
    %cst_48 = arith.constant dense<0.000000e+00> : vector<24xf32>
    %116 = vector.multi_reduction <add>, %115, %cst_48 [1] : vector<24x128xf32> to vector<24xf32>
    %117 = vector.shape_cast %116 : vector<24xf32> to vector<24x1xf32>
    %c0_49 = arith.constant 0 : index
    %c22 = arith.constant 22 : index
    %118 = vector.load %arg6[%c0_49, %c22] : memref<24x32xf32, #tpu.memory_space<vmem>>, vector<24x1xf32>
    tpu.vector_store %arg6[%c0_49, %c22], %117 {strides = array<i32>} : memref<24x32xf32, #tpu.memory_space<vmem>>, vector<24x1xf32>,
    %c105_i32 = arith.constant 105 : i32
    %119 = tpu.dynamic_rotate %0 by %c105_i32 dim 1 : vector<24x128xf32>, i32 -> vector<24x128xf32>
    %120 = arith.mulf %0, %119 : vector<24x128xf32>
    %cst_50 = arith.constant dense<0.000000e+00> : vector<24xf32>
    %121 = vector.multi_reduction <add>, %120, %cst_50 [1] : vector<24x128xf32> to vector<24xf32>
    %122 = vector.shape_cast %121 : vector<24xf32> to vector<24x1xf32>
    %c0_51 = arith.constant 0 : index
    %c23 = arith.constant 23 : index
    %123 = vector.load %arg6[%c0_51, %c23] : memref<24x32xf32, #tpu.memory_space<vmem>>, vector<24x1xf32>
    tpu.vector_store %arg6[%c0_51, %c23], %122 {strides = array<i32>} : memref<24x32xf32, #tpu.memory_space<vmem>>, vector<24x1xf32>,
    %c104_i32 = arith.constant 104 : i32
    %124 = tpu.dynamic_rotate %0 by %c104_i32 dim 1 : vector<24x128xf32>, i32 -> vector<24x128xf32>
    %125 = arith.mulf %0, %124 : vector<24x128xf32>
    %cst_52 = arith.constant dense<0.000000e+00> : vector<24xf32>
    %126 = vector.multi_reduction <add>, %125, %cst_52 [1] : vector<24x128xf32> to vector<24xf32>
    %127 = vector.shape_cast %126 : vector<24xf32> to vector<24x1xf32>
    %c0_53 = arith.constant 0 : index
    %c24 = arith.constant 24 : index
    %128 = vector.load %arg6[%c0_53, %c24] : memref<24x32xf32, #tpu.memory_space<vmem>>, vector<24x1xf32>
    tpu.vector_store %arg6[%c0_53, %c24], %127 {strides = array<i32>} : memref<24x32xf32, #tpu.memory_space<vmem>>, vector<24x1xf32>,
    %c103_i32 = arith.constant 103 : i32
    %129 = tpu.dynamic_rotate %0 by %c103_i32 dim 1 : vector<24x128xf32>, i32 -> vector<24x128xf32>
    %130 = arith.mulf %0, %129 : vector<24x128xf32>
    %cst_54 = arith.constant dense<0.000000e+00> : vector<24xf32>
    %131 = vector.multi_reduction <add>, %130, %cst_54 [1] : vector<24x128xf32> to vector<24xf32>
    %132 = vector.shape_cast %131 : vector<24xf32> to vector<24x1xf32>
    %c0_55 = arith.constant 0 : index
    %c25 = arith.constant 25 : index
    %133 = vector.load %arg6[%c0_55, %c25] : memref<24x32xf32, #tpu.memory_space<vmem>>, vector<24x1xf32>
    tpu.vector_store %arg6[%c0_55, %c25], %132 {strides = array<i32>} : memref<24x32xf32, #tpu.memory_space<vmem>>, vector<24x1xf32>,
    %c102_i32 = arith.constant 102 : i32
    %134 = tpu.dynamic_rotate %0 by %c102_i32 dim 1 : vector<24x128xf32>, i32 -> vector<24x128xf32>
    %135 = arith.mulf %0, %134 : vector<24x128xf32>
    %cst_56 = arith.constant dense<0.000000e+00> : vector<24xf32>
    %136 = vector.multi_reduction <add>, %135, %cst_56 [1] : vector<24x128xf32> to vector<24xf32>
    %137 = vector.shape_cast %136 : vector<24xf32> to vector<24x1xf32>
    %c0_57 = arith.constant 0 : index
    %c26 = arith.constant 26 : index
    %138 = vector.load %arg6[%c0_57, %c26] : memref<24x32xf32, #tpu.memory_space<vmem>>, vector<24x1xf32>
    tpu.vector_store %arg6[%c0_57, %c26], %137 {strides = array<i32>} : memref<24x32xf32, #tpu.memory_space<vmem>>, vector<24x1xf32>,
    %c101_i32 = arith.constant 101 : i32
    %139 = tpu.dynamic_rotate %0 by %c101_i32 dim 1 : vector<24x128xf32>, i32 -> vector<24x128xf32>
    %140 = arith.mulf %0, %139 : vector<24x128xf32>
    %cst_58 = arith.constant dense<0.000000e+00> : vector<24xf32>
    %141 = vector.multi_reduction <add>, %140, %cst_58 [1] : vector<24x128xf32> to vector<24xf32>
    %142 = vector.shape_cast %141 : vector<24xf32> to vector<24x1xf32>
    %c0_59 = arith.constant 0 : index
    %c27 = arith.constant 27 : index
    %143 = vector.load %arg6[%c0_59, %c27] : memref<24x32xf32, #tpu.memory_space<vmem>>, vector<24x1xf32>
    tpu.vector_store %arg6[%c0_59, %c27], %142 {strides = array<i32>} : memref<24x32xf32, #tpu.memory_space<vmem>>, vector<24x1xf32>,
    %c100_i32 = arith.constant 100 : i32
    %144 = tpu.dynamic_rotate %0 by %c100_i32 dim 1 : vector<24x128xf32>, i32 -> vector<24x128xf32>
    %145 = arith.mulf %0, %144 : vector<24x128xf32>
    %cst_60 = arith.constant dense<0.000000e+00> : vector<24xf32>
    %146 = vector.multi_reduction <add>, %145, %cst_60 [1] : vector<24x128xf32> to vector<24xf32>
    %147 = vector.shape_cast %146 : vector<24xf32> to vector<24x1xf32>
    %c0_61 = arith.constant 0 : index
    %c28 = arith.constant 28 : index
    %148 = vector.load %arg6[%c0_61, %c28] : memref<24x32xf32, #tpu.memory_space<vmem>>, vector<24x1xf32>
    tpu.vector_store %arg6[%c0_61, %c28], %147 {strides = array<i32>} : memref<24x32xf32, #tpu.memory_space<vmem>>, vector<24x1xf32>,
    %c99_i32 = arith.constant 99 : i32
    %149 = tpu.dynamic_rotate %0 by %c99_i32 dim 1 : vector<24x128xf32>, i32 -> vector<24x128xf32>
    %150 = arith.mulf %0, %149 : vector<24x128xf32>
    %cst_62 = arith.constant dense<0.000000e+00> : vector<24xf32>
    %151 = vector.multi_reduction <add>, %150, %cst_62 [1] : vector<24x128xf32> to vector<24xf32>
    %152 = vector.shape_cast %151 : vector<24xf32> to vector<24x1xf32>
    %c0_63 = arith.constant 0 : index
    %c29 = arith.constant 29 : index
    %153 = vector.load %arg6[%c0_63, %c29] : memref<24x32xf32, #tpu.memory_space<vmem>>, vector<24x1xf32>
    tpu.vector_store %arg6[%c0_63, %c29], %152 {strides = array<i32>} : memref<24x32xf32, #tpu.memory_space<vmem>>, vector<24x1xf32>,
    %c98_i32 = arith.constant 98 : i32
    %154 = tpu.dynamic_rotate %0 by %c98_i32 dim 1 : vector<24x128xf32>, i32 -> vector<24x128xf32>
    %155 = arith.mulf %0, %154 : vector<24x128xf32>
    %cst_64 = arith.constant dense<0.000000e+00> : vector<24xf32>
    %156 = vector.multi_reduction <add>, %155, %cst_64 [1] : vector<24x128xf32> to vector<24xf32>
    %157 = vector.shape_cast %156 : vector<24xf32> to vector<24x1xf32>
    %c0_65 = arith.constant 0 : index
    %c30 = arith.constant 30 : index
    %158 = vector.load %arg6[%c0_65, %c30] : memref<24x32xf32, #tpu.memory_space<vmem>>, vector<24x1xf32>
    tpu.vector_store %arg6[%c0_65, %c30], %157 {strides = array<i32>} : memref<24x32xf32, #tpu.memory_space<vmem>>, vector<24x1xf32>,
    %c97_i32 = arith.constant 97 : i32
    %159 = tpu.dynamic_rotate %0 by %c97_i32 dim 1 : vector<24x128xf32>, i32 -> vector<24x128xf32>
    %160 = arith.mulf %0, %159 : vector<24x128xf32>
    %cst_66 = arith.constant dense<0.000000e+00> : vector<24xf32>
    %161 = vector.multi_reduction <add>, %160, %cst_66 [1] : vector<24x128xf32> to vector<24xf32>
    %162 = vector.shape_cast %161 : vector<24xf32> to vector<24x1xf32>
    %c0_67 = arith.constant 0 : index
    %c31 = arith.constant 31 : index
    %163 = vector.load %arg6[%c0_67, %c31] : memref<24x32xf32, #tpu.memory_space<vmem>>, vector<24x1xf32>
    tpu.vector_store %arg6[%c0_67, %c31], %162 {strides = array<i32>} : memref<24x32xf32, #tpu.memory_space<vmem>>, vector<24x1xf32>,
    %c0_68 = arith.constant 0 : index
    %c0_69 = arith.constant 0 : index
    %164 = vector.load %arg6[%c0_68, %c0_69] : memref<24x32xf32, #tpu.memory_space<vmem>>, vector<24x32xf32>
    %cst_70 = arith.constant 2.000000e+00 : f32
    %165 = vector.broadcast %cst_70 : f32 to vector<24x32xf32>
    %166 = arith.mulf %165, %164 : vector<24x32xf32>
    %167 = arith.subf %4, %166 : vector<24x32xf32>
    %168 = arith.truncf %167 : vector<24x32xf32> to vector<24x32xbf16>
    %c0_71 = arith.constant 0 : index
    %c0_72 = arith.constant 0 : index
    %169 = vector.load %arg3[%c0_71, %c0_72] : memref<32x32xbf16, #tpu.memory_space<vmem>>, vector<32x32xbf16>
    %cst_73 = arith.constant dense<0.000000e+00> : vector<24x32xf32>
    %170 = tpu.matmul %168, %169, %cst_73 {dimension_numbers = #tpu.dot_dimension_numbers<[1], [0], [0], [1], [0, 0, 1, 1], [], []>} : vector<24x32xbf16>, vector<32x32xbf16>, vector<24x32xf32> -> vector<24x32xf32>
    %171 = tpu.iota {dimensions = array<i32: 1>} : vector<1x32xi32>
    %172 = arith.sitofp %171 : vector<1x32xi32> to vector<1x32xf32>
    %cst_74 = arith.constant 1.000000e-07 : f32
    %173 = vector.broadcast %cst_74 : f32 to vector<24x32xf32>
    %174 = arith.addf %170, %173 : vector<24x32xf32>
    %175 = tpu.reciprocal %174 {approx = true} : vector<24x32xf32> -> vector<24x32xf32>
    %176 = arith.mulf %167, %175 : vector<24x32xf32>
    %177 = vector.broadcast %172 : vector<1x32xf32> to vector<24x32xf32>
    %178 = arith.mulf %176, %177 : vector<24x32xf32>
    %c0_i32 = arith.constant 0 : i32
    %179 = vector.broadcast %c0_i32 : i32 to vector<1x32xi32>
    %180 = arith.cmpi eq, %171, %179 : vector<1x32xi32>
    %cst_75 = arith.constant 1.000000e+00 : f32
    %181 = vector.shape_cast %180 : vector<1x32xi1> to vector<1x32xi1>
    %182 = vector.broadcast %181 : vector<1x32xi1> to vector<24x32xi1>
    %183 = vector.broadcast %cst_75 : f32 to vector<24x32xf32>
    %184 = arith.select %182, %183, %178 : vector<24x32xi1>, vector<24x32xf32>
    %185 = arith.truncf %184 : vector<24x32xf32> to vector<24x32xbf16>
    %c0_76 = arith.constant 0 : index
    %c0_77 = arith.constant 0 : index
    %186 = vector.load %arg4[%c0_76, %c0_77] : memref<32x128xbf16, #tpu.memory_space<vmem>>, vector<32x128xbf16>
    %cst_78 = arith.constant dense<0.000000e+00> : vector<24x128xf32>
    %187 = tpu.matmul %185, %186, %cst_78 {dimension_numbers = #tpu.dot_dimension_numbers<[1], [0], [0], [1], [0, 0, 1, 1], [], []>} : vector<24x32xbf16>, vector<32x128xbf16>, vector<24x128xf32> -> vector<24x128xf32>
    %c0_79 = arith.constant 0 : index
    %c0_80 = arith.constant 0 : index
    %188 = vector.load %arg5[%c0_79, %c0_80] : memref<24x128xf32, #tpu.memory_space<vmem>>, vector<24x128xf32>
    tpu.vector_store %arg5[%c0_79, %c0_80], %187 {strides = array<i32>} : memref<24x128xf32, #tpu.memory_space<vmem>>, vector<24x128xf32>,
    return
  }
  func.func @transform_0(%arg0: i32) -> (i32, i32) {
    %c0_i32 = arith.constant 0 : i32
    %c0_i32_0 = arith.constant 0 : i32
    return %arg0, %c0_i32 : i32, i32
  }
  func.func @transform_1(%arg0: i32) -> (i32, i32) {
    %c0_i32 = arith.constant 0 : i32
    %c0_i32_0 = arith.constant 0 : i32
    %c0_i32_1 = arith.constant 0 : i32
    return %c0_i32, %c0_i32_0 : i32, i32
  }
  func.func @transform_2(%arg0: i32) -> (i32, i32) {
    %c0_i32 = arith.constant 0 : i32
    %c0_i32_0 = arith.constant 0 : i32
    %c0_i32_1 = arith.constant 0 : i32
    return %c0_i32, %c0_i32_0 : i32, i32
  }
  func.func @transform_3(%arg0: i32) -> (i32, i32) {
    %c0_i32 = arith.constant 0 : i32
    %c0_i32_0 = arith.constant 0 : i32
    %c0_i32_1 = arith.constant 0 : i32
    return %c0_i32, %c0_i32_0 : i32, i32
  }
  func.func @transform_4(%arg0: i32) -> (i32, i32) {
    %c0_i32 = arith.constant 0 : i32
    %c0_i32_0 = arith.constant 0 : i32
    return %arg0, %c0_i32 : i32, i32
  }
}

</mosaic_0001>

<llo_original>
// kernel: tpu_custom_call.1
$region0: #{tpu_custom_call.1}
  #allocation0 [shape = 'u32[]', space=smem, size = 0x4, offset = 0x4, fixed_abs, tag = 'smem constant byte address 0x4 - core index']
  #allocation1 [shape = 'u32[144,128]{1,0:T(1,128)}', space=vmem, size = 0x12000, scoped, tag = 'internal scratch']
  #allocation2 [shape = 'f32[24,32]{1,0:T(8,128)}', space=vmem, size = 0x3000, scoped, tag = 'scratch operand']
  %s0 = inlined_call_operand.vmem [shape: f32[24,128], index: 0, kind: input, shape index: {}]
  %s1 = inlined_call_operand.vmem [shape: bf16[128,32], index: 1, kind: input, shape index: {}]
  %s2 = inlined_call_operand.vmem [shape: bf16[32,32], index: 2, kind: input, shape index: {}]
  %s3 = inlined_call_operand.vmem [shape: bf16[32,128], index: 3, kind: input, shape index: {}]
  %s4 = inlined_call_operand.hbm [shape: f32[24,128], index: 4, kind: output, shape index: {}]
  %s5 = sld [smem:[#allocation0]]
  $region26: #{tpu_custom_call.1} parent=0
    _
  %s7 = ssub.s32 1, %s5
  %s8 = scalar_select 0, %s7, %s5
  $region1: #{tpu_custom_call.1} parent=0
    #allocation3 [shape = 'u8[12288]{0}', space=vmem, size = 0x3000, scoped, tag = 'output window, operand 0, single buffered']
    #allocation4 [shape = 's32[1]{0}', space=sflag, size = 0x4, scoped, tag = 'scoped memory for tpu_custom_call.1']
    %9 = vsyncpa [#allocation4], 0
    // Predicated region
    $region2: #{tpu_custom_call.1} parent=1 // pred_check
      _
    $region3: #{tpu_custom_call.1} parent=1 // pred_check_branch
      %11 = sbr.rel (0) target = $region5
    $region4: #{tpu_custom_call.1} parent=1 // pred_region
      _
    $region5: #{tpu_custom_call.1} parent=1 // pred_fallthru
      _
    // Predicated region
    $region6: #{tpu_custom_call.1} parent=1 // pred_check
      _
    $region7: #{tpu_custom_call.1} parent=1 // pred_check_branch
      %13 = sbr.rel (0) target = $region9
    $region8: #{tpu_custom_call.1} parent=1 // pred_region
      _
    $region9: #{tpu_custom_call.1} parent=1 // pred_fallthru
      _
    // Predicated region
    $region10: #{tpu_custom_call.1} parent=1 // pred_check
      _
    $region11: #{tpu_custom_call.1} parent=1 // pred_check_branch
      %15 = sbr.rel (0) target = $region13
    $region12: #{tpu_custom_call.1} parent=1 // pred_region
      _
    $region13: #{tpu_custom_call.1} parent=1 // pred_fallthru
      _
    // Predicated region
    $region14: #{tpu_custom_call.1} parent=1 // pred_check
      _
    $region15: #{tpu_custom_call.1} parent=1 // pred_check_branch
      %17 = sbr.rel (0) target = $region17
    $region16: #{tpu_custom_call.1} parent=1 // pred_region
      _
    $region17: #{tpu_custom_call.1} parent=1 // pred_fallthru
      _
    %v19 = vld [vmem:[%s0] sm:$0xff]
    %v20 = vld [vmem:[%s0 + $0x8] sm:$0xff]
    %v21 = vld [vmem:[%s0 + $0x10] sm:$0xff]
    %v22 = vmul.f32 %v19, %v19
    %v23 = vmul.f32 %v20, %v20
    %v24 = vmul.f32 %v21, %v21
    %v25 = vpack.c.bf16 %v23, %v22
    %v26 = vpack.c.bf16 %v24, %v24
    %v27 = vld [vmem:[%s1] sm:$0xf]
    %v28 = vld [vmem:[%s1 + $0x4] sm:$0xf]
    %v29 = vld [vmem:[%s1 + $0x8] sm:$0xf]
    %v30 = vld [vmem:[%s1 + $0xc] sm:$0xf]
    %v31 = vld [vmem:[%s1 + $0x10] sm:$0xf]
    %v32 = vld [vmem:[%s1 + $0x14] sm:$0xf]
    %v33 = vld [vmem:[%s1 + $0x18] sm:$0xf]
    %v34 = vld [vmem:[%s1 + $0x1c] sm:$0xf]
    %v35 = vld [vmem:[%s1 + $0x20] sm:$0xf]
    %v36 = vld [vmem:[%s1 + $0x24] sm:$0xf]
    %v37 = vld [vmem:[%s1 + $0x28] sm:$0xf]
    %v38 = vld [vmem:[%s1 + $0x2c] sm:$0xf]
    %v39 = vld [vmem:[%s1 + $0x30] sm:$0xf]
    %v40 = vld [vmem:[%s1 + $0x34] sm:$0xf]
    %v41 = vld [vmem:[%s1 + $0x38] sm:$0xf]
    %v42 = vld [vmem:[%s1 + $0x3c] sm:$0xf]
    %v59 = vunpack.c.l.b16 %v27
    %v60 = vunpack.c.l.b16 %v28
    %v61 = vunpack.c.l.b16 %v29
    %v62 = vunpack.c.l.b16 %v30
    %v63 = vunpack.c.l.b16 %v31
    %v64 = vunpack.c.l.b16 %v32
    %v65 = vunpack.c.l.b16 %v33
    %v66 = vunpack.c.l.b16 %v34
    %v67 = vunpack.c.l.b16 %v35
    %v68 = vunpack.c.l.b16 %v36
    %v69 = vunpack.c.l.b16 %v37
    %v70 = vunpack.c.l.b16 %v38
    %v71 = vunpack.c.l.b16 %v39
    %v72 = vunpack.c.l.b16 %v40
    %v73 = vunpack.c.l.b16 %v41
    %v74 = vunpack.c.l.b16 %v42
    %v75 = vpack.c.b16 %v60, %v59
    %v76 = vpack.c.b16 %v62, %v61
    %v77 = vpack.c.b16 %v64, %v63
    %v78 = vpack.c.b16 %v66, %v65
    %v79 = vpack.c.b16 %v68, %v67
    %v80 = vpack.c.b16 %v70, %v69
    %v81 = vpack.c.b16 %v72, %v71
    %v82 = vpack.c.b16 %v74, %v73
    %91 = vmatprep.subr.bf16.mxu0 0
    %92 = vmatpush1.bf16.msra.mxu0 %v75
    %93 = vmatprep.subr.bf16.mxu0 0
    %94 = vmatpush1.bf16.msra.mxu0 %v76
    %95 = vmatprep.subr.bf16.mxu0 0
    %96 = vmatpush1.bf16.msra.mxu0 %v77
    %97 = vmatprep.subr.bf16.mxu0 0
    %98 = vmatpush1.bf16.msra.mxu0 %v78
    %99 = vmatprep.subr.bf16.mxu0 0
    %100 = vmatpush1.bf16.msra.mxu0 %v79
    %101 = vmatprep.subr.bf16.mxu0 0
    %102 = vmatpush1.bf16.msra.mxu0 %v80
    %103 = vmatprep.subr.bf16.mxu0 0
    %104 = vmatpush1.bf16.msra.mxu0 %v81
    %105 = vmatprep.subr.bf16.mxu0 0
    %106 = vmatpush1.bf16.msra.mxu0 %v82
    %107 = vmatprep.subr.bf16.mxu0 0
    %108 = vmatpush1.bf16.msra.mxu0 0
    %109 = vmatprep.subr.bf16.mxu0 0
    %110 = vmatpush1.bf16.msra.mxu0 0
    %111 = vmatprep.subr.bf16.mxu0 0
    %112 = vmatpush1.bf16.msra.mxu0 0
    %113 = vmatprep.subr.bf16.mxu0 0
    %114 = vmatpush1.bf16.msra.mxu0 0
    %115 = vmatprep.subr.bf16.mxu0 0
    %116 = vmatpush1.bf16.msra.mxu0 0
    %117 = vmatprep.subr.bf16.mxu0 0
    %118 = vmatpush1.bf16.msra.mxu0 0
    %119 = vmatprep.subr.bf16.mxu0 0
    %120 = vmatpush1.bf16.msra.mxu0 0
    %121 = vmatprep.subr.bf16.mxu0 0
    %122 = vmatpush1.bf16.msra.mxu0 0
    %123 = vmatprep.mubr.bf16.mxu0 0
    %124 = vmatmul.mubr.bf16.gmra.mrb[0].mxu0 %v25
    %v125 = vpop.f32.mrb[0].mxu0
    %v126 = vadd.f32 0.0, %v125
    %v127 = vpop.f32.mrb[0].mxu0
    %v128 = vpop.f32.mrb[0].mxu0
    %v129 = vadd.f32 0.0, %v128
    %v130 = vpop.f32.mrb[0].mxu0
    %131 = vmatprep.mubr.bf16.mxu0 0
    %132 = vmatmul.mubr.bf16.gmra.mrb[0].mxu0 %v26
    %v133 = vpop.f32.mrb[0].mxu0
    %v134 = vadd.f32 0.0, %v133
    %v135 = vpop.f32.mrb[0].mxu0
    %v136 = vpop.f32.mrb[0].mxu0
    %v137 = vpop.f32.mrb[0].mxu0
    %138 = vdwg.mxu0
    %139 = vadd.xlane.f32.xlu0 %v22
    %v140 = vpop.xlane.xlu0 %139
    %141 = vadd.xlane.f32.xlu0 %v23
    %v142 = vpop.xlane.xlu0 %141
    %143 = vadd.xlane.f32.xlu0 %v24
    %v144 = vpop.xlane.xlu0 %143
    %vm145 = vcmask 7168
    %146 = vst.msk [vmem:[#allocation2] sm:$0xff] %vm145, %v140
    %147 = vst.msk [vmem:[#allocation2 + $0x8] sm:$0xff] %vm145, %v142
    %148 = vst.msk [vmem:[#allocation2 + $0x10] sm:$0xff] %vm145, %v144
    %149 = vrot.lane.b32.xlu0 %v19, 127
    %v150 = vpop.permute.xlu0 %149
    %151 = vrot.lane.b32.xlu0 %v20, 127
    %v152 = vpop.permute.xlu0 %151
    %153 = vrot.lane.b32.xlu0 %v21, 127
    %v154 = vpop.permute.xlu0 %153
    %v155 = vmul.f32 %v19, %v150
    %v156 = vmul.f32 %v20, %v152
    %v157 = vmul.f32 %v21, %v154
    %158 = vadd.xlane.f32.xlu0 %v155
    %v159 = vpop.xlane.xlu0 %158
    %160 = vadd.xlane.f32.xlu0 %v156
    %v161 = vpop.xlane.xlu0 %160
    %162 = vadd.xlane.f32.xlu0 %v157
    %v163 = vpop.xlane.xlu0 %162
    %vm164 = vcmask 15368
    %165 = vst.msk [vmem:[#allocation2] sm:$0xff] %vm164, %v159
    %166 = vst.msk [vmem:[#allocation2 + $0x8] sm:$0xff] %vm164, %v161
    %167 = vst.msk [vmem:[#allocation2 + $0x10] sm:$0xff] %vm164, %v163
    %168 = vrot.lane.b32.xlu0 %v19, 126
    %v169 = vpop.permute.xlu0 %168
    %170 = vrot.lane.b32.xlu0 %v20, 126
    %v171 = vpop.permute.xlu0 %170
    %172 = vrot.lane.b32.xlu0 %v21, 126
    %v173 = vpop.permute.xlu0 %172
    %v174 = vmul.f32 %v19, %v169
    %v175 = vmul.f32 %v20, %v171
    %v176 = vmul.f32 %v21, %v173
    %177 = vadd.xlane.f32.xlu0 %v174
    %v178 = vpop.xlane.xlu0 %177
    %179 = vadd.xlane.f32.xlu0 %v175
    %v180 = vpop.xlane.xlu0 %179
    %181 = vadd.xlane.f32.xlu0 %v176
    %v182 = vpop.xlane.xlu0 %181
    %vm183 = vcmask 23568
    %184 = vst.msk [vmem:[#allocation2] sm:$0xff] %vm183, %v178
    %185 = vst.msk [vmem:[#allocation2 + $0x8] sm:$0xff] %vm183, %v180
    %186 = vst.msk [vmem:[#allocation2 + $0x10] sm:$0xff] %vm183, %v182
    %187 = vrot.lane.b32.xlu0 %v19, 125
    %v188 = vpop.permute.xlu0 %187
    %189 = vrot.lane.b32.xlu0 %v20, 125
    %v190 = vpop.permute.xlu0 %189
    %191 = vrot.lane.b32.xlu0 %v21, 125
    %v192 = vpop.permute.xlu0 %191
    %v193 = vmul.f32 %v19, %v188
    %v194 = vmul.f32 %v20, %v190
    %v195 = vmul.f32 %v21, %v192
    %196 = vadd.xlane.f32.xlu0 %v193
    %v197 = vpop.xlane.xlu0 %196
    %198 = vadd.xlane.f32.xlu0 %v194
    %v199 = vpop.xlane.xlu0 %198
    %200 = vadd.xlane.f32.xlu0 %v195
    %v201 = vpop.xlane.xlu0 %200
    %vm202 = vcmask 31768
    %203 = vst.msk [vmem:[#allocation2] sm:$0xff] %vm202, %v197
    %204 = vst.msk [vmem:[#allocation2 + $0x8] sm:$0xff] %vm202, %v199
    %205 = vst.msk [vmem:[#allocation2 + $0x10] sm:$0xff] %vm202, %v201
    %206 = vrot.lane.b32.xlu0 %v19, 124
    %v207 = vpop.permute.xlu0 %206
    %208 = vrot.lane.b32.xlu0 %v20, 124
    %v209 = vpop.permute.xlu0 %208
    %210 = vrot.lane.b32.xlu0 %v21, 124
    %v211 = vpop.permute.xlu0 %210
    %v212 = vmul.f32 %v19, %v207
    %v213 = vmul.f32 %v20, %v209
    %v214 = vmul.f32 %v21, %v211
    %215 = vadd.xlane.f32.xlu0 %v212
    %v216 = vpop.xlane.xlu0 %215
    %217 = vadd.xlane.f32.xlu0 %v213
    %v218 = vpop.xlane.xlu0 %217
    %219 = vadd.xlane.f32.xlu0 %v214
    %v220 = vpop.xlane.xlu0 %219
    %vm221 = vcmask 39968
    %222 = vst.msk [vmem:[#allocation2] sm:$0xff] %vm221, %v216
    %223 = vst.msk [vmem:[#allocation2 + $0x8] sm:$0xff] %vm221, %v218
    %224 = vst.msk [vmem:[#allocation2 + $0x10] sm:$0xff] %vm221, %v220
    %225 = vrot.lane.b32.xlu0 %v19, 123
    %v226 = vpop.permute.xlu0 %225
    %227 = vrot.lane.b32.xlu0 %v20, 123
    %v228 = vpop.permute.xlu0 %227
    %229 = vrot.lane.b32.xlu0 %v21, 123
    %v230 = vpop.permute.xlu0 %229
    %v231 = vmul.f32 %v19, %v226
    %v232 = vmul.f32 %v20, %v228
    %v233 = vmul.f32 %v21, %v230
    %234 = vadd.xlane.f32.xlu0 %v231
    %v235 = vpop.xlane.xlu0 %234
    %236 = vadd.xlane.f32.xlu0 %v232
    %v237 = vpop.xlane.xlu0 %236
    %238 = vadd.xlane.f32.xlu0 %v233
    %v239 = vpop.xlane.xlu0 %238
    %vm240 = vcmask 48168
    %241 = vst.msk [vmem:[#allocation2] sm:$0xff] %vm240, %v235
    %242 = vst.msk [vmem:[#allocation2 + $0x8] sm:$0xff] %vm240, %v237
    %243 = vst.msk [vmem:[#allocation2 + $0x10] sm:$0xff] %vm240, %v239
    %244 = vrot.lane.b32.xlu0 %v19, 122
    %v245 = vpop.permute.xlu0 %244
    %246 = vrot.lane.b32.xlu0 %v20, 122
    %v247 = vpop.permute.xlu0 %246
    %248 = vrot.lane.b32.xlu0 %v21, 122
    %v249 = vpop.permute.xlu0 %248
    %v250 = vmul.f32 %v19, %v245
    %v251 = vmul.f32 %v20, %v247
    %v252 = vmul.f32 %v21, %v249
    %253 = vadd.xlane.f32.xlu0 %v250
    %v254 = vpop.xlane.xlu0 %253
    %255 = vadd.xlane.f32.xlu0 %v251
    %v256 = vpop.xlane.xlu0 %255
    %257 = vadd.xlane.f32.xlu0 %v252
    %v258 = vpop.xlane.xlu0 %257
    %vm259 = vcmask 56368
    %260 = vst.msk [vmem:[#allocation2] sm:$0xff] %vm259, %v254
    %261 = vst.msk [vmem:[#allocation2 + $0x8] sm:$0xff] %vm259, %v256
    %262 = vst.msk [vmem:[#allocation2 + $0x10] sm:$0xff] %vm259, %v258
    %263 = vrot.lane.b32.xlu0 %v19, 121
    %v264 = vpop.permute.xlu0 %263
    %265 = vrot.lane.b32.xlu0 %v20, 121
    %v266 = vpop.permute.xlu0 %265
    %267 = vrot.lane.b32.xlu0 %v21, 121
    %v268 = vpop.permute.xlu0 %267
    %v269 = vmul.f32 %v19, %v264
    %v270 = vmul.f32 %v20, %v266
    %v271 = vmul.f32 %v21, %v268
    %272 = vadd.xlane.f32.xlu0 %v269
    %v273 = vpop.xlane.xlu0 %272
    %274 = vadd.xlane.f32.xlu0 %v270
    %v275 = vpop.xlane.xlu0 %274
    %276 = vadd.xlane.f32.xlu0 %v271
    %v277 = vpop.xlane.xlu0 %276
    %vm278 = vcmask 64568
    %279 = vst.msk [vmem:[#allocation2] sm:$0xff] %vm278, %v273
    %280 = vst.msk [vmem:[#allocation2 + $0x8] sm:$0xff] %vm278, %v275
    %281 = vst.msk [vmem:[#allocation2 + $0x10] sm:$0xff] %vm278, %v277
    %282 = vrot.lane.b32.xlu0 %v19, 120
    %v283 = vpop.permute.xlu0 %282
    %284 = vrot.lane.b32.xlu0 %v20, 120
    %v285 = vpop.permute.xlu0 %284
    %286 = vrot.lane.b32.xlu0 %v21, 120
    %v287 = vpop.permute.xlu0 %286
    %v288 = vmul.f32 %v19, %v283
    %v289 = vmul.f32 %v20, %v285
    %v290 = vmul.f32 %v21, %v287
    %291 = vadd.xlane.f32.xlu0 %v288
    %v292 = vpop.xlane.xlu0 %291
    %293 = vadd.xlane.f32.xlu0 %v289
    %v294 = vpop.xlane.xlu0 %293
    %295 = vadd.xlane.f32.xlu0 %v290
    %v296 = vpop.xlane.xlu0 %295
    %vm297 = vcmask 72768
    %298 = vst.msk [vmem:[#allocation2] sm:$0xff] %vm297, %v292
    %299 = vst.msk [vmem:[#allocation2 + $0x8] sm:$0xff] %vm297, %v294
    %300 = vst.msk [vmem:[#allocation2 + $0x10] sm:$0xff] %vm297, %v296
    %301 = vrot.lane.b32.xlu0 %v19, 119
    %v302 = vpop.permute.xlu0 %301
    %303 = vrot.lane.b32.xlu0 %v20, 119
    %v304 = vpop.permute.xlu0 %303
    %305 = vrot.lane.b32.xlu0 %v21, 119
    %v306 = vpop.permute.xlu0 %305
    %v307 = vmul.f32 %v19, %v302
    %v308 = vmul.f32 %v20, %v304
    %v309 = vmul.f32 %v21, %v306
    %310 = vadd.xlane.f32.xlu0 %v307
    %v311 = vpop.xlane.xlu0 %310
    %312 = vadd.xlane.f32.xlu0 %v308
    %v313 = vpop.xlane.xlu0 %312
    %314 = vadd.xlane.f32.xlu0 %v309
    %v315 = vpop.xlane.xlu0 %314
    %vm316 = vcmask 80968
    %317 = vst.msk [vmem:[#allocation2] sm:$0xff] %vm316, %v311
    %318 = vst.msk [vmem:[#allocation2 + $0x8] sm:$0xff] %vm316, %v313
    %319 = vst.msk [vmem:[#allocation2 + $0x10] sm:$0xff] %vm316, %v315
    %320 = vrot.lane.b32.xlu0 %v19, 118
    %v321 = vpop.permute.xlu0 %320
    %322 = vrot.lane.b32.xlu0 %v20, 118
    %v323 = vpop.permute.xlu0 %322
    %324 = vrot.lane.b32.xlu0 %v21, 118
    %v325 = vpop.permute.xlu0 %324
    %v326 = vmul.f32 %v19, %v321
    %v327 = vmul.f32 %v20, %v323
    %v328 = vmul.f32 %v21, %v325
    %329 = vadd.xlane.f32.xlu0 %v326
    %v330 = vpop.xlane.xlu0 %329
    %331 = vadd.xlane.f32.xlu0 %v327
    %v332 = vpop.xlane.xlu0 %331
    %333 = vadd.xlane.f32.xlu0 %v328
    %v334 = vpop.xlane.xlu0 %333
    %vm335 = vcmask 89168
    %336 = vst.msk [vmem:[#allocation2] sm:$0xff] %vm335, %v330
    %337 = vst.msk [vmem:[#allocation2 + $0x8] sm:$0xff] %vm335, %v332
    %338 = vst.msk [vmem:[#allocation2 + $0x10] sm:$0xff] %vm335, %v334
    %339 = vrot.lane.b32.xlu0 %v19, 117
    %v340 = vpop.permute.xlu0 %339
    %341 = vrot.lane.b32.xlu0 %v20, 117
    %v342 = vpop.permute.xlu0 %341
    %343 = vrot.lane.b32.xlu0 %v21, 117
    %v344 = vpop.permute.xlu0 %343
    %v345 = vmul.f32 %v19, %v340
    %v346 = vmul.f32 %v20, %v342
    %v347 = vmul.f32 %v21, %v344
    %348 = vadd.xlane.f32.xlu0 %v345
    %v349 = vpop.xlane.xlu0 %348
    %350 = vadd.xlane.f32.xlu0 %v346
    %v351 = vpop.xlane.xlu0 %350
    %352 = vadd.xlane.f32.xlu0 %v347
    %v353 = vpop.xlane.xlu0 %352
    %vm354 = vcmask 97368
    %355 = vst.msk [vmem:[#allocation2] sm:$0xff] %vm354, %v349
    %356 = vst.msk [vmem:[#allocation2 + $0x8] sm:$0xff] %vm354, %v351
    %357 = vst.msk [vmem:[#allocation2 + $0x10] sm:$0xff] %vm354, %v353
    %358 = vrot.lane.b32.xlu0 %v19, 116
    %v359 = vpop.permute.xlu0 %358
    %360 = vrot.lane.b32.xlu0 %v20, 116
    %v361 = vpop.permute.xlu0 %360
    %362 = vrot.lane.b32.xlu0 %v21, 116
    %v363 = vpop.permute.xlu0 %362
    %v364 = vmul.f32 %v19, %v359
    %v365 = vmul.f32 %v20, %v361
    %v366 = vmul.f32 %v21, %v363
    %367 = vadd.xlane.f32.xlu0 %v364
    %v368 = vpop.xlane.xlu0 %367
    %369 = vadd.xlane.f32.xlu0 %v365
    %v370 = vpop.xlane.xlu0 %369
    %371 = vadd.xlane.f32.xlu0 %v366
    %v372 = vpop.xlane.xlu0 %371
    %vm373 = vcmask 105568
    %374 = vst.msk [vmem:[#allocation2] sm:$0xff] %vm373, %v368
    %375 = vst.msk [vmem:[#allocation2 + $0x8] sm:$0xff] %vm373, %v370
    %376 = vst.msk [vmem:[#allocation2 + $0x10] sm:$0xff] %vm373, %v372
    %377 = vrot.lane.b32.xlu0 %v19, 115
    %v378 = vpop.permute.xlu0 %377
    %379 = vrot.lane.b32.xlu0 %v20, 115
    %v380 = vpop.permute.xlu0 %379
    %381 = vrot.lane.b32.xlu0 %v21, 115
    %v382 = vpop.permute.xlu0 %381
    %v383 = vmul.f32 %v19, %v378
    %v384 = vmul.f32 %v20, %v380
    %v385 = vmul.f32 %v21, %v382
    %386 = vadd.xlane.f32.xlu0 %v383
    %v387 = vpop.xlane.xlu0 %386
    %388 = vadd.xlane.f32.xlu0 %v384
    %v389 = vpop.xlane.xlu0 %388
    %390 = vadd.xlane.f32.xlu0 %v385
    %v391 = vpop.xlane.xlu0 %390
    %vm392 = vcmask 113768
    %393 = vst.msk [vmem:[#allocation2] sm:$0xff] %vm392, %v387
    %394 = vst.msk [vmem:[#allocation2 + $0x8] sm:$0xff] %vm392, %v389
    %395 = vst.msk [vmem:[#allocation2 + $0x10] sm:$0xff] %vm392, %v391
    %396 = vrot.lane.b32.xlu0 %v19, 114
    %v397 = vpop.permute.xlu0 %396
    %398 = vrot.lane.b32.xlu0 %v20, 114
    %v399 = vpop.permute.xlu0 %398
    %400 = vrot.lane.b32.xlu0 %v21, 114
    %v401 = vpop.permute.xlu0 %400
    %v402 = vmul.f32 %v19, %v397
    %v403 = vmul.f32 %v20, %v399
    %v404 = vmul.f32 %v21, %v401
    %405 = vadd.xlane.f32.xlu0 %v402
    %v406 = vpop.xlane.xlu0 %405
    %407 = vadd.xlane.f32.xlu0 %v403
    %v408 = vpop.xlane.xlu0 %407
    %409 = vadd.xlane.f32.xlu0 %v404
    %v410 = vpop.xlane.xlu0 %409
    %vm411 = vcmask 121968
    %412 = vst.msk [vmem:[#allocation2] sm:$0xff] %vm411, %v406
    %413 = vst.msk [vmem:[#allocation2 + $0x8] sm:$0xff] %vm411, %v408
    %414 = vst.msk [vmem:[#allocation2 + $0x10] sm:$0xff] %vm411, %v410
    %415 = vrot.lane.b32.xlu0 %v19, 113
    %v416 = vpop.permute.xlu0 %415
    %417 = vrot.lane.b32.xlu0 %v20, 113
    %v418 = vpop.permute.xlu0 %417
    %419 = vrot.lane.b32.xlu0 %v21, 113
    %v420 = vpop.permute.xlu0 %419
    %v421 = vmul.f32 %v19, %v416
    %v422 = vmul.f32 %v20, %v418
    %v423 = vmul.f32 %v21, %v420
    %424 = vadd.xlane.f32.xlu0 %v421
    %v425 = vpop.xlane.xlu0 %424
    %426 = vadd.xlane.f32.xlu0 %v422
    %v427 = vpop.xlane.xlu0 %426
    %428 = vadd.xlane.f32.xlu0 %v423
    %v429 = vpop.xlane.xlu0 %428
    %vm430 = vcmask 130168
    %431 = vst.msk [vmem:[#allocation2] sm:$0xff] %vm430, %v425
    %432 = vst.msk [vmem:[#allocation2 + $0x8] sm:$0xff] %vm430, %v427
    %433 = vst.msk [vmem:[#allocation2 + $0x10] sm:$0xff] %vm430, %v429
    %434 = vrot.lane.b32.xlu0 %v19, 112
    %v435 = vpop.permute.xlu0 %434
    %436 = vrot.lane.b32.xlu0 %v20, 112
    %v437 = vpop.permute.xlu0 %436
    %438 = vrot.lane.b32.xlu0 %v21, 112
    %v439 = vpop.permute.xlu0 %438
    %v440 = vmul.f32 %v19, %v435
    %v441 = vmul.f32 %v20, %v437
    %v442 = vmul.f32 %v21, %v439
    %443 = vadd.xlane.f32.xlu0 %v440
    %v444 = vpop.xlane.xlu0 %443
    %445 = vadd.xlane.f32.xlu0 %v441
    %v446 = vpop.xlane.xlu0 %445
    %447 = vadd.xlane.f32.xlu0 %v442
    %v448 = vpop.xlane.xlu0 %447
    %vm449 = vcmask 138368
    %450 = vst.msk [vmem:[#allocation2] sm:$0xff] %vm449, %v444
    %451 = vst.msk [vmem:[#allocation2 + $0x8] sm:$0xff] %vm449, %v446
    %452 = vst.msk [vmem:[#allocation2 + $0x10] sm:$0xff] %vm449, %v448
    %453 = vrot.lane.b32.xlu0 %v19, 111
    %v454 = vpop.permute.xlu0 %453
    %455 = vrot.lane.b32.xlu0 %v20, 111
    %v456 = vpop.permute.xlu0 %455
    %457 = vrot.lane.b32.xlu0 %v21, 111
    %v458 = vpop.permute.xlu0 %457
    %v459 = vmul.f32 %v19, %v454
    %v460 = vmul.f32 %v20, %v456
    %v461 = vmul.f32 %v21, %v458
    %462 = vadd.xlane.f32.xlu0 %v459
    %v463 = vpop.xlane.xlu0 %462
    %464 = vadd.xlane.f32.xlu0 %v460
    %v465 = vpop.xlane.xlu0 %464
    %466 = vadd.xlane.f32.xlu0 %v461
    %v467 = vpop.xlane.xlu0 %466
    %vm468 = vcmask 146568
    %469 = vst.msk [vmem:[#allocation2] sm:$0xff] %vm468, %v463
    %470 = vst.msk [vmem:[#allocation2 + $0x8] sm:$0xff] %vm468, %v465
    %471 = vst.msk [vmem:[#allocation2 + $0x10] sm:$0xff] %vm468, %v467
    %472 = vrot.lane.b32.xlu0 %v19, 110
    %v473 = vpop.permute.xlu0 %472
    %474 = vrot.lane.b32.xlu0 %v20, 110
    %v475 = vpop.permute.xlu0 %474
    %476 = vrot.lane.b32.xlu0 %v21, 110
    %v477 = vpop.permute.xlu0 %476
    %v478 = vmul.f32 %v19, %v473
    %v479 = vmul.f32 %v20, %v475
    %v480 = vmul.f32 %v21, %v477
    %481 = vadd.xlane.f32.xlu0 %v478
    %v482 = vpop.xlane.xlu0 %481
    %483 = vadd.xlane.f32.xlu0 %v479
    %v484 = vpop.xlane.xlu0 %483
    %485 = vadd.xlane.f32.xlu0 %v480
    %v486 = vpop.xlane.xlu0 %485
    %vm487 = vcmask 154768
    %488 = vst.msk [vmem:[#allocation2] sm:$0xff] %vm487, %v482
    %489 = vst.msk [vmem:[#allocation2 + $0x8] sm:$0xff] %vm487, %v484
    %490 = vst.msk [vmem:[#allocation2 + $0x10] sm:$0xff] %vm487, %v486
    %491 = vrot.lane.b32.xlu0 %v19, 109
    %v492 = vpop.permute.xlu0 %491
    %493 = vrot.lane.b32.xlu0 %v20, 109
    %v494 = vpop.permute.xlu0 %493
    %495 = vrot.lane.b32.xlu0 %v21, 109
    %v496 = vpop.permute.xlu0 %495
    %v497 = vmul.f32 %v19, %v492
    %v498 = vmul.f32 %v20, %v494
    %v499 = vmul.f32 %v21, %v496
    %500 = vadd.xlane.f32.xlu0 %v497
    %v501 = vpop.xlane.xlu0 %500
    %502 = vadd.xlane.f32.xlu0 %v498
    %v503 = vpop.xlane.xlu0 %502
    %504 = vadd.xlane.f32.xlu0 %v499
    %v505 = vpop.xlane.xlu0 %504
    %vm506 = vcmask 162968
    %507 = vst.msk [vmem:[#allocation2] sm:$0xff] %vm506, %v501
    %508 = vst.msk [vmem:[#allocation2 + $0x8] sm:$0xff] %vm506, %v503
    %509 = vst.msk [vmem:[#allocation2 + $0x10] sm:$0xff] %vm506, %v505
    %510 = vrot.lane.b32.xlu0 %v19, 108
    %v511 = vpop.permute.xlu0 %510
    %512 = vrot.lane.b32.xlu0 %v20, 108
    %v513 = vpop.permute.xlu0 %512
    %514 = vrot.lane.b32.xlu0 %v21, 108
    %v515 = vpop.permute.xlu0 %514
    %v516 = vmul.f32 %v19, %v511
    %v517 = vmul.f32 %v20, %v513
    %v518 = vmul.f32 %v21, %v515
    %519 = vadd.xlane.f32.xlu0 %v516
    %v520 = vpop.xlane.xlu0 %519
    %521 = vadd.xlane.f32.xlu0 %v517
    %v522 = vpop.xlane.xlu0 %521
    %523 = vadd.xlane.f32.xlu0 %v518
    %v524 = vpop.xlane.xlu0 %523
    %vm525 = vcmask 171168
    %526 = vst.msk [vmem:[#allocation2] sm:$0xff] %vm525, %v520
    %527 = vst.msk [vmem:[#allocation2 + $0x8] sm:$0xff] %vm525, %v522
    %528 = vst.msk [vmem:[#allocation2 + $0x10] sm:$0xff] %vm525, %v524
    %529 = vrot.lane.b32.xlu0 %v19, 107
    %v530 = vpop.permute.xlu0 %529
    %531 = vrot.lane.b32.xlu0 %v20, 107
    %v532 = vpop.permute.xlu0 %531
    %533 = vrot.lane.b32.xlu0 %v21, 107
    %v534 = vpop.permute.xlu0 %533
    %v535 = vmul.f32 %v19, %v530
    %v536 = vmul.f32 %v20, %v532
    %v537 = vmul.f32 %v21, %v534
    %538 = vadd.xlane.f32.xlu0 %v535
    %v539 = vpop.xlane.xlu0 %538
    %540 = vadd.xlane.f32.xlu0 %v536
    %v541 = vpop.xlane.xlu0 %540
    %542 = vadd.xlane.f32.xlu0 %v537
    %v543 = vpop.xlane.xlu0 %542
    %vm544 = vcmask 179368
    %545 = vst.msk [vmem:[#allocation2] sm:$0xff] %vm544, %v539
    %546 = vst.msk [vmem:[#allocation2 + $0x8] sm:$0xff] %vm544, %v541
    %547 = vst.msk [vmem:[#allocation2 + $0x10] sm:$0xff] %vm544, %v543
    %548 = vrot.lane.b32.xlu0 %v19, 106
    %v549 = vpop.permute.xlu0 %548
    %550 = vrot.lane.b32.xlu0 %v20, 106
    %v551 = vpop.permute.xlu0 %550
    %552 = vrot.lane.b32.xlu0 %v21, 106
    %v553 = vpop.permute.xlu0 %552
    %v554 = vmul.f32 %v19, %v549
    %v555 = vmul.f32 %v20, %v551
    %v556 = vmul.f32 %v21, %v553
    %557 = vadd.xlane.f32.xlu0 %v554
    %v558 = vpop.xlane.xlu0 %557
    %559 = vadd.xlane.f32.xlu0 %v555
    %v560 = vpop.xlane.xlu0 %559
    %561 = vadd.xlane.f32.xlu0 %v556
    %v562 = vpop.xlane.xlu0 %561
    %vm563 = vcmask 187568
    %564 = vst.msk [vmem:[#allocation2] sm:$0xff] %vm563, %v558
    %565 = vst.msk [vmem:[#allocation2 + $0x8] sm:$0xff] %vm563, %v560
    %566 = vst.msk [vmem:[#allocation2 + $0x10] sm:$0xff] %vm563, %v562
    %567 = vrot.lane.b32.xlu0 %v19, 105
    %v568 = vpop.permute.xlu0 %567
    %569 = vrot.lane.b32.xlu0 %v20, 105
    %v570 = vpop.permute.xlu0 %569
    %571 = vrot.lane.b32.xlu0 %v21, 105
    %v572 = vpop.permute.xlu0 %571
    %v573 = vmul.f32 %v19, %v568
    %v574 = vmul.f32 %v20, %v570
    %v575 = vmul.f32 %v21, %v572
    %576 = vadd.xlane.f32.xlu0 %v573
    %v577 = vpop.xlane.xlu0 %576
    %578 = vadd.xlane.f32.xlu0 %v574
    %v579 = vpop.xlane.xlu0 %578
    %580 = vadd.xlane.f32.xlu0 %v575
    %v581 = vpop.xlane.xlu0 %580
    %vm582 = vcmask 195768
    %583 = vst.msk [vmem:[#allocation2] sm:$0xff] %vm582, %v577
    %584 = vst.msk [vmem:[#allocation2 + $0x8] sm:$0xff] %vm582, %v579
    %585 = vst.msk [vmem:[#allocation2 + $0x10] sm:$0xff] %vm582, %v581
    %586 = vrot.lane.b32.xlu0 %v19, 104
    %v587 = vpop.permute.xlu0 %586
    %588 = vrot.lane.b32.xlu0 %v20, 104
    %v589 = vpop.permute.xlu0 %588
    %590 = vrot.lane.b32.xlu0 %v21, 104
    %v591 = vpop.permute.xlu0 %590
    %v592 = vmul.f32 %v19, %v587
    %v593 = vmul.f32 %v20, %v589
    %v594 = vmul.f32 %v21, %v591
    %595 = vadd.xlane.f32.xlu0 %v592
    %v596 = vpop.xlane.xlu0 %595
    %597 = vadd.xlane.f32.xlu0 %v593
    %v598 = vpop.xlane.xlu0 %597
    %599 = vadd.xlane.f32.xlu0 %v594
    %v600 = vpop.xlane.xlu0 %599
    %vm601 = vcmask 203968
    %602 = vst.msk [vmem:[#allocation2] sm:$0xff] %vm601, %v596
    %603 = vst.msk [vmem:[#allocation2 + $0x8] sm:$0xff] %vm601, %v598
    %604 = vst.msk [vmem:[#allocation2 + $0x10] sm:$0xff] %vm601, %v600
    %605 = vrot.lane.b32.xlu0 %v19, 103
    %v606 = vpop.permute.xlu0 %605
    %607 = vrot.lane.b32.xlu0 %v20, 103
    %v608 = vpop.permute.xlu0 %607
    %609 = vrot.lane.b32.xlu0 %v21, 103
    %v610 = vpop.permute.xlu0 %609
    %v611 = vmul.f32 %v19, %v606
    %v612 = vmul.f32 %v20, %v608
    %v613 = vmul.f32 %v21, %v610
    %614 = vadd.xlane.f32.xlu0 %v611
    %v615 = vpop.xlane.xlu0 %614
    %616 = vadd.xlane.f32.xlu0 %v612
    %v617 = vpop.xlane.xlu0 %616
    %618 = vadd.xlane.f32.xlu0 %v613
    %v619 = vpop.xlane.xlu0 %618
    %vm620 = vcmask 212168
    %621 = vst.msk [vmem:[#allocation2] sm:$0xff] %vm620, %v615
    %622 = vst.msk [vmem:[#allocation2 + $0x8] sm:$0xff] %vm620, %v617
    %623 = vst.msk [vmem:[#allocation2 + $0x10] sm:$0xff] %vm620, %v619
    %624 = vrot.lane.b32.xlu0 %v19, 102
    %v625 = vpop.permute.xlu0 %624
    %626 = vrot.lane.b32.xlu0 %v20, 102
    %v627 = vpop.permute.xlu0 %626
    %628 = vrot.lane.b32.xlu0 %v21, 102
    %v629 = vpop.permute.xlu0 %628
    %v630 = vmul.f32 %v19, %v625
    %v631 = vmul.f32 %v20, %v627
    %v632 = vmul.f32 %v21, %v629
    %633 = vadd.xlane.f32.xlu0 %v630
    %v634 = vpop.xlane.xlu0 %633
    %635 = vadd.xlane.f32.xlu0 %v631
    %v636 = vpop.xlane.xlu0 %635
    %637 = vadd.xlane.f32.xlu0 %v632
    %v638 = vpop.xlane.xlu0 %637
    %vm639 = vcmask 220368
    %640 = vst.msk [vmem:[#allocation2] sm:$0xff] %vm639, %v634
    %641 = vst.msk [vmem:[#allocation2 + $0x8] sm:$0xff] %vm639, %v636
    %642 = vst.msk [vmem:[#allocation2 + $0x10] sm:$0xff] %vm639, %v638
    %643 = vrot.lane.b32.xlu0 %v19, 101
    %v644 = vpop.permute.xlu0 %643
    %645 = vrot.lane.b32.xlu0 %v20, 101
    %v646 = vpop.permute.xlu0 %645
    %647 = vrot.lane.b32.xlu0 %v21, 101
    %v648 = vpop.permute.xlu0 %647
    %v649 = vmul.f32 %v19, %v644
    %v650 = vmul.f32 %v20, %v646
    %v651 = vmul.f32 %v21, %v648
    %652 = vadd.xlane.f32.xlu0 %v649
    %v653 = vpop.xlane.xlu0 %652
    %654 = vadd.xlane.f32.xlu0 %v650
    %v655 = vpop.xlane.xlu0 %654
    %656 = vadd.xlane.f32.xlu0 %v651
    %v657 = vpop.xlane.xlu0 %656
    %vm658 = vcmask 228568
    %659 = vst.msk [vmem:[#allocation2] sm:$0xff] %vm658, %v653
    %660 = vst.msk [vmem:[#allocation2 + $0x8] sm:$0xff] %vm658, %v655
    %661 = vst.msk [vmem:[#allocation2 + $0x10] sm:$0xff] %vm658, %v657
    %662 = vrot.lane.b32.xlu0 %v19, 100
    %v663 = vpop.permute.xlu0 %662
    %664 = vrot.lane.b32.xlu0 %v20, 100
    %v665 = vpop.permute.xlu0 %664
    %666 = vrot.lane.b32.xlu0 %v21, 100
    %v667 = vpop.permute.xlu0 %666
    %v668 = vmul.f32 %v19, %v663
    %v669 = vmul.f32 %v20, %v665
    %v670 = vmul.f32 %v21, %v667
    %671 = vadd.xlane.f32.xlu0 %v668
    %v672 = vpop.xlane.xlu0 %671
    %673 = vadd.xlane.f32.xlu0 %v669
    %v674 = vpop.xlane.xlu0 %673
    %675 = vadd.xlane.f32.xlu0 %v670
    %v676 = vpop.xlane.xlu0 %675
    %vm677 = vcmask 236768
    %678 = vst.msk [vmem:[#allocation2] sm:$0xff] %vm677, %v672
    %679 = vst.msk [vmem:[#allocation2 + $0x8] sm:$0xff] %vm677, %v674
    %680 = vst.msk [vmem:[#allocation2 + $0x10] sm:$0xff] %vm677, %v676
    %681 = vrot.lane.b32.xlu0 %v19, 99
    %v682 = vpop.permute.xlu0 %681
    %683 = vrot.lane.b32.xlu0 %v20, 99
    %v684 = vpop.permute.xlu0 %683
    %685 = vrot.lane.b32.xlu0 %v21, 99
    %v686 = vpop.permute.xlu0 %685
    %v687 = vmul.f32 %v19, %v682
    %v688 = vmul.f32 %v20, %v684
    %v689 = vmul.f32 %v21, %v686
    %690 = vadd.xlane.f32.xlu0 %v687
    %v691 = vpop.xlane.xlu0 %690
    %692 = vadd.xlane.f32.xlu0 %v688
    %v693 = vpop.xlane.xlu0 %692
    %694 = vadd.xlane.f32.xlu0 %v689
    %v695 = vpop.xlane.xlu0 %694
    %vm696 = vcmask 244968
    %697 = vst.msk [vmem:[#allocation2] sm:$0xff] %vm696, %v691
    %698 = vst.msk [vmem:[#allocation2 + $0x8] sm:$0xff] %vm696, %v693
    %699 = vst.msk [vmem:[#allocation2 + $0x10] sm:$0xff] %vm696, %v695
    %700 = vrot.lane.b32.xlu0 %v19, 98
    %v701 = vpop.permute.xlu0 %700
    %702 = vrot.lane.b32.xlu0 %v20, 98
    %v703 = vpop.permute.xlu0 %702
    %704 = vrot.lane.b32.xlu0 %v21, 98
    %v705 = vpop.permute.xlu0 %704
    %v706 = vmul.f32 %v19, %v701
    %v707 = vmul.f32 %v20, %v703
    %v708 = vmul.f32 %v21, %v705
    %709 = vadd.xlane.f32.xlu0 %v706
    %v710 = vpop.xlane.xlu0 %709
    %711 = vadd.xlane.f32.xlu0 %v707
    %v712 = vpop.xlane.xlu0 %711
    %713 = vadd.xlane.f32.xlu0 %v708
    %v714 = vpop.xlane.xlu0 %713
    %vm715 = vcmask 253168
    %716 = vst.msk [vmem:[#allocation2] sm:$0xff] %vm715, %v710
    %717 = vst.msk [vmem:[#allocation2 + $0x8] sm:$0xff] %vm715, %v712
    %718 = vst.msk [vmem:[#allocation2 + $0x10] sm:$0xff] %vm715, %v714
    %719 = vrot.lane.b32.xlu0 %v19, 97
    %v720 = vpop.permute.xlu0 %719
    %721 = vrot.lane.b32.xlu0 %v20, 97
    %v722 = vpop.permute.xlu0 %721
    %723 = vrot.lane.b32.xlu0 %v21, 97
    %v724 = vpop.permute.xlu0 %723
    %v725 = vmul.f32 %v19, %v720
    %v726 = vmul.f32 %v20, %v722
    %v727 = vmul.f32 %v21, %v724
    %728 = vadd.xlane.f32.xlu0 %v725
    %v729 = vpop.xlane.xlu0 %728
    %730 = vadd.xlane.f32.xlu0 %v726
    %v731 = vpop.xlane.xlu0 %730
    %732 = vadd.xlane.f32.xlu0 %v727
    %v733 = vpop.xlane.xlu0 %732
    %vm734 = vcmask 261368
    %735 = vst.msk [vmem:[#allocation2] sm:$0xff] %vm734, %v729
    %736 = vst.msk [vmem:[#allocation2 + $0x8] sm:$0xff] %vm734, %v731
    %737 = vst.msk [vmem:[#allocation2 + $0x10] sm:$0xff] %vm734, %v733
    %v738 = vld [vmem:[#allocation2] sm:$0xff]
    %v739 = vld [vmem:[#allocation2 + $0x8] sm:$0xff]
    %v740 = vld [vmem:[#allocation2 + $0x10] sm:$0xff]
    %v741 = vmul.f32 %v738, 2.0
    %v742 = vmul.f32 %v739, 2.0
    %v743 = vmul.f32 %v740, 2.0
    %v744 = vsub.f32 %v126, %v741
    %v745 = vsub.f32 %v129, %v742
    %v746 = vsub.f32 %v134, %v743
    %v747 = vpack.c.bf16 %v745, %v744
    %v748 = vpack.c.bf16 %v746, %v746
    %v749 = vld [vmem:[%s2] sm:$0xf]
    %v750 = vld [vmem:[%s2 + $0x4] sm:$0xf]
    %v751 = vld [vmem:[%s2 + $0x8] sm:$0xf]
    %v752 = vld [vmem:[%s2 + $0xc] sm:$0xf]
    %v753 = vlaneseq
    %v754 = vand.u32 %v753, 127
    %v755 = vcvt.s32.f32 %v754
    %v760 = vunpack.c.l.b16 %v749
    %v761 = vunpack.c.l.b16 %v750
    %v762 = vunpack.c.l.b16 %v751
    %v763 = vunpack.c.l.b16 %v752
    %v764 = vpack.c.b16 %v761, %v760
    %v765 = vpack.c.b16 %v763, %v762
    %vm768 = vcmask 261120
    %v770 = vsel %vm768, %v747, 0
    %v773 = vsel %vm768, %v748, 0
    %775 = vmatprep.subr.bf16.mxu0 0
    %776 = vmatpush1.bf16.msra.mxu0 %v764
    %777 = vmatprep.subr.bf16.mxu0 0
    %778 = vmatpush1.bf16.msra.mxu0 %v765
    %779 = vmatprep.subr.bf16.mxu0 0
    %780 = vmatpush1.bf16.msra.mxu0 0
    %781 = vmatprep.subr.bf16.mxu0 0
    %782 = vmatpush1.bf16.msra.mxu0 0
    %783 = vmatprep.subr.bf16.mxu0 0
    %784 = vmatpush1.bf16.msra.mxu0 0
    %785 = vmatprep.subr.bf16.mxu0 0
    %786 = vmatpush1.bf16.msra.mxu0 0
    %787 = vmatprep.subr.bf16.mxu0 0
    %788 = vmatpush1.bf16.msra.mxu0 0
    %789 = vmatprep.subr.bf16.mxu0 0
    %790 = vmatpush1.bf16.msra.mxu0 0
    %791 = vmatprep.subr.bf16.mxu0 0
    %792 = vmatpush1.bf16.msra.mxu0 0
    %793 = vmatprep.subr.bf16.mxu0 0
    %794 = vmatpush1.bf16.msra.mxu0 0
    %795 = vmatprep.subr.bf16.mxu0 0
    %796 = vmatpush1.bf16.msra.mxu0 0
    %797 = vmatprep.subr.bf16.mxu0 0
    %798 = vmatpush1.bf16.msra.mxu0 0
    %799 = vmatprep.subr.bf16.mxu0 0
    %800 = vmatpush1.bf16.msra.mxu0 0
    %801 = vmatprep.subr.bf16.mxu0 0
    %802 = vmatpush1.bf16.msra.mxu0 0
    %803 = vmatprep.subr.bf16.mxu0 0
    %804 = vmatpush1.bf16.msra.mxu0 0
    %805 = vmatprep.subr.bf16.mxu0 0
    %806 = vmatpush1.bf16.msra.mxu0 0
    %807 = vmatprep.mubr.bf16.mxu0 0
    %808 = vmatmul.mubr.bf16.gmra.mrb[0].mxu0 %v770
    %v809 = vpop.f32.mrb[0].mxu0
    %v810 = vadd.f32 1e-07, %v809
    %v811 = vpop.f32.mrb[0].mxu0
    %v812 = vpop.f32.mrb[0].mxu0
    %v813 = vadd.f32 1e-07, %v812
    %v814 = vpop.f32.mrb[0].mxu0
    %815 = vmatprep.mubr.bf16.mxu0 0
    %816 = vmatmul.mubr.bf16.gmra.mrb[0].mxu0 %v773
    %v817 = vpop.f32.mrb[0].mxu0
    %v818 = vadd.f32 1e-07, %v817
    %v819 = vpop.f32.mrb[0].mxu0
    %v820 = vpop.f32.mrb[0].mxu0
    %v821 = vpop.f32.mrb[0].mxu0
    %822 = vdwg.mxu0
    %v823 = vrcp.pop %v810
    %v824 = vrcp.pop %v813
    %v825 = vrcp.pop %v818
    %v826 = vmul.f32 %v744, %v823
    %v827 = vmul.f32 %v745, %v824
    %v828 = vmul.f32 %v746, %v825
    %v829 = vmul.f32 %v826, %v755
    %v830 = vmul.f32 %v827, %v755
    %v831 = vmul.f32 %v828, %v755
    %vm832 = vcmp.eq.s32.totalorder %v754, 0
    %v833 = vsel %vm832, 1, 0
    %vm834 = vcmp.eq.s32.totalorder %v833, 1
    %v835 = vsel %vm834, 1.0, %v829
    %v836 = vsel %vm834, 1.0, %v830
    %v837 = vsel %vm834, 1.0, %v831
    %v838 = vpack.c.bf16 %v836, %v835
    %v839 = vpack.c.bf16 %v837, %v837
    %v840 = vld [vmem:[%s3] sm:$0xf]
    %v841 = vld [vmem:[%s3 + $0x4] sm:$0xf]
    %v842 = vld [vmem:[%s3 + $0x8] sm:$0xf]
    %v843 = vld [vmem:[%s3 + $0xc] sm:$0xf]
    %v848 = vunpack.c.l.b16 %v840
    %v849 = vunpack.c.l.b16 %v841
    %v850 = vunpack.c.l.b16 %v842
    %v851 = vunpack.c.l.b16 %v843
    %v852 = vpack.c.b16 %v849, %v848
    %v853 = vpack.c.b16 %v851, %v850
    %v857 = vsel %vm768, %v838, 0
    %v860 = vsel %vm768, %v839, 0
    %862 = vmatprep.subr.bf16.mxu0 0
    %863 = vmatpush1.bf16.msra.mxu0 %v852
    %864 = vmatprep.subr.bf16.mxu0 0
    %865 = vmatpush1.bf16.msra.mxu0 %v853
    %866 = vmatprep.subr.bf16.mxu0 0
    %867 = vmatpush1.bf16.msra.mxu0 0
    %868 = vmatprep.subr.bf16.mxu0 0
    %869 = vmatpush1.bf16.msra.mxu0 0
    %870 = vmatprep.subr.bf16.mxu0 0
    %871 = vmatpush1.bf16.msra.mxu0 0
    %872 = vmatprep.subr.bf16.mxu0 0
    %873 = vmatpush1.bf16.msra.mxu0 0
    %874 = vmatprep.subr.bf16.mxu0 0
    %875 = vmatpush1.bf16.msra.mxu0 0
    %876 = vmatprep.subr.bf16.mxu0 0
    %877 = vmatpush1.bf16.msra.mxu0 0
    %878 = vmatprep.subr.bf16.mxu0 0
    %879 = vmatpush1.bf16.msra.mxu0 0
    %880 = vmatprep.subr.bf16.mxu0 0
    %881 = vmatpush1.bf16.msra.mxu0 0
    %882 = vmatprep.subr.bf16.mxu0 0
    %883 = vmatpush1.bf16.msra.mxu0 0
    %884 = vmatprep.subr.bf16.mxu0 0
    %885 = vmatpush1.bf16.msra.mxu0 0
    %886 = vmatprep.subr.bf16.mxu0 0
    %887 = vmatpush1.bf16.msra.mxu0 0
    %888 = vmatprep.subr.bf16.mxu0 0
    %889 = vmatpush1.bf16.msra.mxu0 0
    %890 = vmatprep.subr.bf16.mxu0 0
    %891 = vmatpush1.bf16.msra.mxu0 0
    %892 = vmatprep.subr.bf16.mxu0 0
    %893 = vmatpush1.bf16.msra.mxu0 0
    %894 = vmatprep.mubr.bf16.mxu0 0
    %895 = vmatmul.mubr.bf16.gmra.mrb[0].mxu0 %v857
    %v896 = vpop.f32.mrb[0].mxu0
    %v897 = vadd.f32 0.0, %v896
    %v898 = vpop.f32.mrb[0].mxu0
    %v899 = vpop.f32.mrb[0].mxu0
    %v900 = vadd.f32 0.0, %v899
    %v901 = vpop.f32.mrb[0].mxu0
    %902 = vmatprep.mubr.bf16.mxu0 0
    %903 = vmatmul.mubr.bf16.gmra.mrb[0].mxu0 %v860
    %v904 = vpop.f32.mrb[0].mxu0
    %v905 = vadd.f32 0.0, %v904
    %v906 = vpop.f32.mrb[0].mxu0
    %v907 = vpop.f32.mrb[0].mxu0
    %v908 = vpop.f32.mrb[0].mxu0
    %909 = vdwg.mxu0
    %910 = vst [vmem:[#allocation3] sm:$0xff] %v897
    %911 = vst [vmem:[#allocation3 + $0x8] sm:$0xff] %v900
    %912 = vst [vmem:[#allocation3 + $0x10] sm:$0xff] %v905
    // Predicated region
    $region18: #{tpu_custom_call.1} parent=1 // pred_check
      _
    $region19: #{tpu_custom_call.1} parent=1 // pred_check_branch
      %914 = sbr.rel (0) target = $region21
    $region20: #{tpu_custom_call.1} parent=1 // pred_region
      %s916 = ssub.s32 384, 384
      %917 = vsyncadd [#allocation4], %s916
      %s918 = sshll.u32 [#allocation3], 4
      %s919 = int_to_ptr.vmem [resolvable:$true] %s918
      %924 = dma.vmem_to_hbm [thread:$0]  %s919, 384, %s4, [#allocation4], 128, 128, 8
    $region21: #{tpu_custom_call.1} parent=1 // pred_fallthru
      _
    // Predicated region
    $region22: #{tpu_custom_call.1} parent=1 // pred_check
      _
    $region23: #{tpu_custom_call.1} parent=1 // pred_check_branch
      %926 = sbr.rel (0) target = $region25
    $region24: #{tpu_custom_call.1} parent=1 // pred_region
      %927 = dma.done [#allocation4], 384
    $region25: #{tpu_custom_call.1} parent=1 // pred_fallthru
      _
    %928 = vsyncpa [#allocation4], 1

</llo_original>
